<compile_context>
chip_gen: v7x
topology: tpu7x:2x2x1
jax: 0.10.0
libtpu: 0.0.40
codegen_flags: <defaults>
</compile_context>

<pallas_src>
import math

import jax
import jax.numpy as jnp
from jax.experimental import pallas as pl
from jax.experimental.pallas import tpu as pltpu


def _round_up(v, m):
    return (v + m - 1) // m * m


def _pick_divisor(n, candidates):
    for c in candidates:
        if n % c == 0:
            return c
    return n


def _pad_to(a, shape):
    pads = [(0, t - s) for s, t in zip(a.shape, shape)]
    if any(p for _, p in pads):
        a = jnp.pad(a, pads)
    return a


def _vmem_capacity_bytes():
    try:
        info = pltpu.get_tpu_info()
        cap = getattr(info, "vmem_capacity_bytes", None)
        if cap:
            return int(cap)
    except Exception:
        pass
    return 64 * 1024 * 1024  # v7x floor -- safe assumption everywhere


# -----------------------------------------------------------------------------
# kernels: grid = (B, m_tiles, R, k_tiles); r and k are reduction ('arbitrary')
# -----------------------------------------------------------------------------

def _gcn_kernel_hoisted(graph_ref, xw_ref, x_m_ref, w0t_ref, out_ref, acc_ref):
    """Hot loop when x @ W is hoisted: acc += graph_tile @ XW_tile."""
    r = pl.program_id(2)
    k = pl.program_id(3)

    @pl.when((r == 0) & (k == 0))
    def _init():
        # self-loop term for this node tile: x[m] @ W0^T -> (TM, HP) f32
        acc_ref[...] = jnp.dot(x_m_ref[...], w0t_ref[...],
                               preferred_element_type=jnp.float32)

    g = graph_ref[...].astype(jnp.bfloat16)      # per-tile cast (VPU filler)
    acc_ref[...] += jnp.dot(g, xw_ref[...],
                            preferred_element_type=jnp.float32)

    @pl.when((r == pl.num_programs(2) - 1) & (k == pl.num_programs(3) - 1))
    def _finalize():
        out_ref[...] = jnp.maximum(acc_ref[...], 0.0).astype(out_ref.dtype)


def _make_gcn_kernel_fused(TM, TK, w_resident):
    """Hot loop for D >= 128: acc += (graph_tile @ x_k) @ W[r]; x[b] resident."""

    def kernel(graph_ref, x_ref, w_ref, w0t_ref, out_ref, acc_ref):
        m = pl.program_id(1)
        r = pl.program_id(2)
        k = pl.program_id(3)

        @pl.when((r == 0) & (k == 0))
        def _init():
            x_m = x_ref[pl.ds(pl.multiple_of(m * TM, TM), TM), :]
            acc_ref[...] = jnp.dot(x_m, w0t_ref[...],
                                   preferred_element_type=jnp.float32)

        w_r = w_ref[r] if w_resident else w_ref[...]                 # (D, HP)
        g = graph_ref[...].astype(jnp.bfloat16)
        x_k = x_ref[pl.ds(pl.multiple_of(k * TK, TK), TK), :]
        agg = jnp.dot(g, x_k, preferred_element_type=jnp.float32)    # (TM, D)
        acc_ref[...] += jnp.dot(agg.astype(jnp.bfloat16), w_r,
                                preferred_element_type=jnp.float32)  # (TM, HP)

        @pl.when((r == pl.num_programs(2) - 1) & (k == pl.num_programs(3) - 1))
        def _finalize():
            out_ref[...] = jnp.maximum(acc_ref[...], 0.0).astype(out_ref.dtype)

    return kernel


# -----------------------------------------------------------------------------
# wrapper
# -----------------------------------------------------------------------------

def gcn_encoder_forward(x, graph, W, W0_weight):
    """x: (B,N,D), graph: (B,R,N,N), W: (R,D,H), W0_weight: (H,D) -> (B,N,H)."""
    B, N, D = x.shape
    assert graph.shape[0] == B and graph.shape[2] == N and graph.shape[3] == N
    R = graph.shape[1]
    H = W.shape[-1]
    assert W.shape == (R, D, H) and W0_weight.shape == (H, D)
    assert R >= 1

    out_dtype = x.dtype
    out_isz = jnp.dtype(out_dtype).itemsize
    cdt = jnp.bfloat16

    # ---- tiling --------------------------------------------------------------
    HP = _round_up(H, 128)                      # lane-dense output / W columns
    NP = _round_up(N, 128)                      # lane-dense graph tiles
    vmem_cap = _vmem_capacity_bytes()

    if NP <= 512:
        TM = TK = NP
        if B == 1 and NP >= 256:
            TM = NP // 2                        # v7x: give both TensorCores work
    else:
        tk_cands = ([2048, 1024, 512, 256, 128] if vmem_cap >= (96 << 20)
                    else [1024, 512, 256, 128])
        TK = _pick_divisor(NP, tk_cands)        # long contiguous graph DMAs
        TM = _pick_divisor(NP, [256, 128])
    m_tiles, k_tiles = NP // TM, NP // TK

    # trace-time contraction order: hoist x@W when D is narrow (MXU underfill)
    # or when HP <= D (graph @ XW is also fewer in-kernel flops).
    xw_hoisted = (D < 128) or (HP <= _round_up(D, 128))
    w_resident = (not xw_hoisted) and (R * D * HP * 2 <= 4 * 1024 * 1024)

    # ---- pad / cast the small operands; graph stays in its input dtype -------
    graph_p = _pad_to(graph, (B, R, NP, NP))    # no-op when N % 128 == 0
    x_p = _pad_to(x.astype(cdt), (B, NP, D))
    W_p = _pad_to(W.astype(cdt), (R, D, HP))
    W0T_p = _pad_to(W0_weight.T.astype(cdt), (D, HP))

    if xw_hoisted:
        # one cheap XLA einsum, reused by every node tile of the hot loop
        XW = jnp.einsum("bnd,rdh->brnh", x_p, W_p,
                        preferred_element_type=jnp.float32).astype(cdt)

    # ---- VMEM budget (double-buffered working set) ----------------------------
    g_isz = jnp.dtype(graph_p.dtype).itemsize
    ws = (2 * TM * TK * g_isz          # graph tiles
          + 2 * TM * HP * out_isz      # output blocks
          + TM * HP * 4                # f32 accumulator scratch
          + D * HP * 2)                # W0^T (single-buffered)
    if xw_hoisted:
        ws += 2 * TK * HP * 2 + 2 * TM * D * 2
    else:
        ws += 2 * NP * D * 2
        ws += (R * D * HP * 2) if w_resident else (2 * D * HP * 2)
    vmem_limit = min(max(int(ws * 1.4) + (4 << 20), 32 << 20),
                     int(vmem_cap * 0.7))

    # ---- advisory cost estimate -----------------------------------------------
    steps = B * m_tiles * R * k_tiles
    self_flops = 2 * B * m_tiles * TM * D * HP
    if xw_hoisted:
        flops = 2 * steps * TM * TK * HP + self_flops
        bytes_accessed = (B * R * NP * NP * g_isz + steps * TK * HP * 2
                          + B * m_tiles * TM * D * 2 + D * HP * 2
                          + B * NP * HP * out_isz)
    else:
        flops = steps * (2 * TM * TK * D + 2 * TM * D * HP) + self_flops
        bytes_accessed = (B * R * NP * NP * g_isz + 2 * B * NP * D * 2
                          + R * D * HP * 2 + D * HP * 2 + B * NP * HP * out_isz)

    graph_spec = pl.BlockSpec((None, None, TM, TK),
                              lambda b, m, r, k: (b, r, m, k))
    out_spec = pl.BlockSpec((None, TM, HP), lambda b, m, r, k: (b, m, 0))

    def _call(single_buffer_weights):
        buf1 = ({"pipeline_mode": pl.Buffered(1)}
                if single_buffer_weights else {})
        w0t_spec = pl.BlockSpec((D, HP), lambda b, m, r, k: (0, 0), **buf1)

        if xw_hoisted:
            kernel = _gcn_kernel_hoisted
            in_specs = [
                graph_spec,
                pl.BlockSpec((None, None, TK, HP),
                             lambda b, m, r, k: (b, r, k, 0)),     # XW tile
                pl.BlockSpec((None, TM, D),
                             lambda b, m, r, k: (b, m, 0)),        # x (self term)
                w0t_spec,
            ]
            operands = (graph_p, XW, x_p, W0T_p)
        else:
            kernel = _make_gcn_kernel_fused(TM, TK, w_resident)
            if w_resident:
                w_spec = pl.BlockSpec((R, D, HP),
                                      lambda b, m, r, k: (0, 0, 0), **buf1)
            else:
                w_spec = pl.BlockSpec((None, D, HP),
                                      lambda b, m, r, k: (r, 0, 0))
            in_specs = [
                graph_spec,
                pl.BlockSpec((None, NP, D),
                             lambda b, m, r, k: (b, 0, 0)),        # resident x[b]
                w_spec,
                w0t_spec,
            ]
            operands = (graph_p, x_p, W_p, W0T_p)

        return pl.pallas_call(
            kernel,
            out_shape=jax.ShapeDtypeStruct((B, NP, HP), out_dtype),
            grid_spec=pltpu.PrefetchScalarGridSpec(
                num_scalar_prefetch=0,
                grid=(B, m_tiles, R, k_tiles),
                in_specs=in_specs,
                out_specs=out_spec,
                scratch_shapes=[pltpu.VMEM((TM, HP), jnp.float32)]),
            compiler_params=pltpu.CompilerParams(
                dimension_semantics=("parallel", "parallel",
                                     "arbitrary", "arbitrary"),
                vmem_limit_bytes=int(vmem_limit)),
            cost_estimate=pl.CostEstimate(
                flops=int(flops), transcendentals=0,
                bytes_accessed=int(bytes_accessed)),
        )(*operands)

    try:
        out_p = _call(True)
    except Exception:
        # TODO(synk): pipeline_mode=pl.Buffered(1) unsupported in this jax
        # build; retry with default double-buffering for the weight operands.
        out_p = _call(False)

    return out_p[:, :N, :H]


# -----------------------------------------------------------------------------
# helpers / reference / demo
# -----------------------------------------------------------------------------

def compute_basis_W(W1, W2):
    """Glue for the B > 0 (basis decomposition) branch of __init__:
    W = matmul(W2, W1.permute(1,0,2)).permute(1,0,2) == einsum('rk,kdh->rdh')."""
    return jnp.einsum("rk,kdh->rdh", W2, W1)


def xavier_uniform(key, shape):
    """torch.nn.init.xavier_uniform_ for an N-D tensor."""
    receptive = 1
    for s in shape[2:]:
        receptive *= s
    fan_in = shape[1] * receptive
    fan_out = shape[0] * receptive
    bound = math.sqrt(6.0 / (fan_in + fan_out))
    return jax.random.uniform(key, shape, dtype=jnp.float32,
                              minval=-bound, maxval=bound)


def reference_forward(x, graph, W, W0_weight):
    xt = jnp.einsum("brnm,bmd->brnd", graph, x)
    xt = jnp.einsum("brnd,rdh->bnh", xt, W)
    xs = jnp.einsum("bnd,hd->bnh", x, W0_weight)
    return jax.nn.relu(xt + xs)


def _make_inputs(key, B, R, N, D, H):
    kx, kg, kw, kw0 = jax.random.split(key, 4)
    x = jax.random.normal(kx, (B, N, D), dtype=jnp.float32)
    graph = jax.random.uniform(kg, (B, R, N, N), dtype=jnp.float32)
    W = xavier_uniform(kw, (R, D, H))
    lin_bound = 1.0 / math.sqrt(D)  # torch Linear default (kaiming-uniform)
    W0_weight = jax.random.uniform(kw0, (H, D), dtype=jnp.float32,
                                   minval=-lin_bound, maxval=lin_bound)
    return x, graph, W, W0_weight


def _check(name, out, ref):
    scale = jnp.maximum(1.0, jnp.max(jnp.abs(ref)))
    err = float(jnp.max(jnp.abs(out - ref)) / scale)
    assert err < 3e-2, f"{name}: relative error {err:.4f} vs reference"


if __name__ == "__main__":
    key = jax.random.PRNGKey(0)
    k1, k2 = jax.random.split(key)

    # case 1: small input dim -> hoisted x@W path (batch=2, relations=3, nodes=16)
    B, R, N, D, H = 2, 3, 16, 8, 32
    x, graph, W, W0_weight = _make_inputs(k1, B, R, N, D, H)
    out = jax.block_until_ready(gcn_encoder_forward(x, graph, W, W0_weight))
    assert out.shape == (B, N, H) and out.dtype == x.dtype
    _check("hoisted-xw path", out, reference_forward(x, graph, W, W0_weight))

    # case 2: D >= 128 -> fused (graph @ x) @ W path with resident x / resident W
    B, R, N, D, H = 1, 2, 24, 128, 160
    x, graph, W, W0_weight = _make_inputs(k2, B, R, N, D, H)
    out = jax.block_until_ready(gcn_encoder_forward(x, graph, W, W0_weight))
    assert out.shape == (B, N, H) and out.dtype == x.dtype
    _check("fused path", out, reference_forward(x, graph, W, W0_weight))

    print("KERNEL_OK")
</pallas_src>

<mosaic_0001>
module attributes {stable_mosaic.version = 11 : i64} {
  func.func @_gcn_kernel_hoisted(%arg0: i32, %arg1: i32, %arg2: i32, %arg3: i32, %arg4: memref<1x1x128x128xf32, #tpu.memory_space<vmem>>, %arg5: memref<1x1x128x128xbf16, #tpu.memory_space<vmem>>, %arg6: memref<1x128x8xbf16, #tpu.memory_space<vmem>>, %arg7: memref<8x128xbf16, #tpu.memory_space<vmem>>, %arg8: memref<1x128x128xf32, #tpu.memory_space<vmem>>, %arg9: memref<128x128xf32, #tpu.memory_space<vmem>>) attributes {dimension_semantics = [#tpu.dimension_semantics<parallel>, #tpu.dimension_semantics<parallel>, #tpu.dimension_semantics<arbitrary>, #tpu.dimension_semantics<arbitrary>], iteration_bounds = array<i64: 2, 1, 3, 1>, scalar_prefetch = 0 : i64, scratch_operands = 1 : i64, tpu.core_type = #tpu.core_type<tc>, window_params = [{transform_indices = @transform_0, window_bounds = array<i64: 1, 1, 128, 128>}, {transform_indices = @transform_1, window_bounds = array<i64: 1, 1, 128, 128>}, {transform_indices = @transform_2, window_bounds = array<i64: 1, 128, 8>}, {pipeline_mode = #tpu.pipeline_mode<synchronous>, transform_indices = @transform_3, window_bounds = array<i64: 8, 128>}, {transform_indices = @transform_4, window_bounds = array<i64: 1, 128, 128>}]} {
    %c0_i32 = arith.constant 0 : i32
    %0 = arith.cmpi eq, %arg2, %c0_i32 : i32
    %c0_i32_0 = arith.constant 0 : i32
    %1 = arith.cmpi eq, %arg3, %c0_i32_0 : i32
    %2 = arith.andi %0, %1 : i1
    %3 = arith.extui %2 : i1 to i32
    %c0_i32_1 = arith.constant 0 : i32
    %4 = arith.cmpi ne, %3, %c0_i32_1 : i32
    scf.if %4 {
      %c0_15 = arith.constant 0 : index
      %c0_16 = arith.constant 0 : index
      %c0_17 = arith.constant 0 : index
      %19 = vector.load %arg6[%c0_15, %c0_16, %c0_17] : memref<1x128x8xbf16, #tpu.memory_space<vmem>>, vector<1x128x8xbf16>
      %20 = vector.shape_cast %19 : vector<1x128x8xbf16> to vector<128x8xbf16>
      %c0_18 = arith.constant 0 : index
      %c0_19 = arith.constant 0 : index
      %21 = vector.load %arg7[%c0_18, %c0_19] : memref<8x128xbf16, #tpu.memory_space<vmem>>, vector<8x128xbf16>
      %cst_20 = arith.constant dense<0.000000e+00> : vector<128x128xf32>
      %22 = tpu.matmul %20, %21, %cst_20 {dimension_numbers = #tpu.dot_dimension_numbers<[1], [0], [0], [1], [0, 0, 1, 1], [], []>} : vector<128x8xbf16>, vector<8x128xbf16>, vector<128x128xf32> -> vector<128x128xf32>
      %c0_21 = arith.constant 0 : index
      %c0_22 = arith.constant 0 : index
      %23 = vector.load %arg9[%c0_21, %c0_22] : memref<128x128xf32, #tpu.memory_space<vmem>>, vector<128x128xf32>
      tpu.vector_store %arg9[%c0_21, %c0_22], %22 {strides = array<i32>} : memref<128x128xf32, #tpu.memory_space<vmem>>, vector<128x128xf32>,
    } else {
    }
    %c0 = arith.constant 0 : index
    %c0_2 = arith.constant 0 : index
    %c0_3 = arith.constant 0 : index
    %c0_4 = arith.constant 0 : index
    %5 = vector.load %arg4[%c0, %c0_2, %c0_3, %c0_4] : memref<1x1x128x128xf32, #tpu.memory_space<vmem>>, vector<1x1x128x128xf32>
    %6 = vector.shape_cast %5 : vector<1x1x128x128xf32> to vector<128x128xf32>
    %7 = arith.truncf %6 : vector<128x128xf32> to vector<128x128xbf16>
    %c0_5 = arith.constant 0 : index
    %c0_6 = arith.constant 0 : index
    %8 = vector.load %arg9[%c0_5, %c0_6] : memref<128x128xf32, #tpu.memory_space<vmem>>, vector<128x128xf32>
    %c0_7 = arith.constant 0 : index
    %c0_8 = arith.constant 0 : index
    %c0_9 = arith.constant 0 : index
    %c0_10 = arith.constant 0 : index
    %9 = vector.load %arg5[%c0_7, %c0_8, %c0_9, %c0_10] : memref<1x1x128x128xbf16, #tpu.memory_space<vmem>>, vector<1x1x128x128xbf16>
    %10 = vector.shape_cast %9 : vector<1x1x128x128xbf16> to vector<128x128xbf16>
    %cst = arith.constant dense<0.000000e+00> : vector<128x128xf32>
    %11 = tpu.matmul %7, %10, %cst {dimension_numbers = #tpu.dot_dimension_numbers<[1], [0], [0], [1], [0, 0, 1, 1], [], []>} : vector<128x128xbf16>, vector<128x128xbf16>, vector<128x128xf32> -> vector<128x128xf32>
    %12 = arith.addf %8, %11 : vector<128x128xf32>
    %c0_11 = arith.constant 0 : index
    %c0_12 = arith.constant 0 : index
    %13 = vector.load %arg9[%c0_11, %c0_12] : memref<128x128xf32, #tpu.memory_space<vmem>>, vector<128x128xf32>
    tpu.vector_store %arg9[%c0_11, %c0_12], %12 {strides = array<i32>} : memref<128x128xf32, #tpu.memory_space<vmem>>, vector<128x128xf32>,
    %c2_i32 = arith.constant 2 : i32
    %14 = arith.cmpi eq, %arg2, %c2_i32 : i32
    %c0_i32_13 = arith.constant 0 : i32
    %15 = arith.cmpi eq, %arg3, %c0_i32_13 : i32
    %16 = arith.andi %14, %15 : i1
    %17 = arith.extui %16 : i1 to i32
    %c0_i32_14 = arith.constant 0 : i32
    %18 = arith.cmpi ne, %17, %c0_i32_14 : i32
    scf.if %18 {
      %c0_15 = arith.constant 0 : index
      %c0_16 = arith.constant 0 : index
      %19 = vector.load %arg9[%c0_15, %c0_16] : memref<128x128xf32, #tpu.memory_space<vmem>>, vector<128x128xf32>
      %cst_17 = arith.constant 0.000000e+00 : f32
      %20 = vector.broadcast %cst_17 : f32 to vector<128x128xf32>
      %21 = arith.maximumf %19, %20 : vector<128x128xf32>
      %c0_18 = arith.constant 0 : index
      %c0_19 = arith.constant 0 : index
      %c0_20 = arith.constant 0 : index
      %22 = vector.load %arg8[%c0_18, %c0_19, %c0_20] : memref<1x128x128xf32, #tpu.memory_space<vmem>>, vector<1x128x128xf32>
      %23 = vector.shape_cast %22 : vector<1x128x128xf32> to vector<128x128xf32>
      %24 = vector.shape_cast %21 : vector<128x128xf32> to vector<1x128x128xf32>
      tpu.vector_store %arg8[%c0_18, %c0_19, %c0_20], %24 {strides = array<i32>} : memref<1x128x128xf32, #tpu.memory_space<vmem>>, vector<1x128x128xf32>,
    } else {
    }
    return
  }
  func.func @transform_0(%arg0: i32, %arg1: i32, %arg2: i32, %arg3: i32) -> (i32, i32, i32, i32) {
    %c0_i32 = arith.constant 0 : i32
    return %arg0, %arg2, %arg1, %arg3 : i32, i32, i32, i32
  }
  func.func @transform_1(%arg0: i32, %arg1: i32, %arg2: i32, %arg3: i32) -> (i32, i32, i32, i32) {
    %c0_i32 = arith.constant 0 : i32
    %c0_i32_0 = arith.constant 0 : i32
    return %arg0, %arg2, %arg3, %c0_i32 : i32, i32, i32, i32
  }
  func.func @transform_2(%arg0: i32, %arg1: i32, %arg2: i32, %arg3: i32) -> (i32, i32, i32) {
    %c0_i32 = arith.constant 0 : i32
    %c0_i32_0 = arith.constant 0 : i32
    return %arg0, %arg1, %c0_i32 : i32, i32, i32
  }
  func.func @transform_3(%arg0: i32, %arg1: i32, %arg2: i32, %arg3: i32) -> (i32, i32) {
    %c0_i32 = arith.constant 0 : i32
    %c0_i32_0 = arith.constant 0 : i32
    %c0_i32_1 = arith.constant 0 : i32
    return %c0_i32, %c0_i32_0 : i32, i32
  }
  func.func @transform_4(%arg0: i32, %arg1: i32, %arg2: i32, %arg3: i32) -> (i32, i32, i32) {
    %c0_i32 = arith.constant 0 : i32
    %c0_i32_0 = arith.constant 0 : i32
    return %arg0, %arg1, %c0_i32 : i32, i32, i32
  }
}

module attributes {stable_mosaic.version = 11 : i64} {
  func.func @_gcn_kernel_hoisted(%arg0: i32, %arg1: i32, %arg2: i32, %arg3: i32, %arg4: memref<1x1x128x128xf32, #tpu.memory_space<vmem>>, %arg5: memref<1x1x128x128xbf16, #tpu.memory_space<vmem>>, %arg6: memref<1x128x8xbf16, #tpu.memory_space<vmem>>, %arg7: memref<8x128xbf16, #tpu.memory_space<vmem>>, %arg8: memref<1x128x128xf32, #tpu.memory_space<vmem>>, %arg9: memref<128x128xf32, #tpu.memory_space<vmem>>) attributes {dimension_semantics = [#tpu.dimension_semantics<parallel>, #tpu.dimension_semantics<parallel>, #tpu.dimension_semantics<arbitrary>, #tpu.dimension_semantics<arbitrary>], iteration_bounds = array<i64: 2, 1, 3, 1>, scalar_prefetch = 0 : i64, scratch_operands = 1 : i64, tpu.core_type = #tpu.core_type<tc>, window_params = [{transform_indices = @transform_0, window_bounds = array<i64: 1, 1, 128, 128>}, {transform_indices = @transform_1, window_bounds = array<i64: 1, 1, 128, 128>}, {transform_indices = @transform_2, window_bounds = array<i64: 1, 128, 8>}, {pipeline_mode = #tpu.pipeline_mode<synchronous>, transform_indices = @transform_3, window_bounds = array<i64: 8, 128>}, {transform_indices = @transform_4, window_bounds = array<i64: 1, 128, 128>}]} {
    %c0_i32 = arith.constant 0 : i32
    %0 = arith.cmpi eq, %arg2, %c0_i32 : i32
    %c0_i32_0 = arith.constant 0 : i32
    %1 = arith.cmpi eq, %arg3, %c0_i32_0 : i32
    %2 = arith.andi %0, %1 : i1
    %3 = arith.extui %2 : i1 to i32
    %c0_i32_1 = arith.constant 0 : i32
    %4 = arith.cmpi ne, %3, %c0_i32_1 : i32
    scf.if %4 {
      %c0_15 = arith.constant 0 : index
      %c0_16 = arith.constant 0 : index
      %c0_17 = arith.constant 0 : index
      %19 = vector.load %arg6[%c0_15, %c0_16, %c0_17] : memref<1x128x8xbf16, #tpu.memory_space<vmem>>, vector<1x128x8xbf16>
      %20 = vector.shape_cast %19 : vector<1x128x8xbf16> to vector<128x8xbf16>
      %c0_18 = arith.constant 0 : index
      %c0_19 = arith.constant 0 : index
      %21 = vector.load %arg7[%c0_18, %c0_19] : memref<8x128xbf16, #tpu.memory_space<vmem>>, vector<8x128xbf16>
      %cst_20 = arith.constant dense<0.000000e+00> : vector<128x128xf32>
      %22 = tpu.matmul %20, %21, %cst_20 {dimension_numbers = #tpu.dot_dimension_numbers<[1], [0], [0], [1], [0, 0, 1, 1], [], []>} : vector<128x8xbf16>, vector<8x128xbf16>, vector<128x128xf32> -> vector<128x128xf32>
      %c0_21 = arith.constant 0 : index
      %c0_22 = arith.constant 0 : index
      %23 = vector.load %arg9[%c0_21, %c0_22] : memref<128x128xf32, #tpu.memory_space<vmem>>, vector<128x128xf32>
      tpu.vector_store %arg9[%c0_21, %c0_22], %22 {strides = array<i32>} : memref<128x128xf32, #tpu.memory_space<vmem>>, vector<128x128xf32>,
    } else {
    }
    %c0 = arith.constant 0 : index
    %c0_2 = arith.constant 0 : index
    %c0_3 = arith.constant 0 : index
    %c0_4 = arith.constant 0 : index
    %5 = vector.load %arg4[%c0, %c0_2, %c0_3, %c0_4] : memref<1x1x128x128xf32, #tpu.memory_space<vmem>>, vector<1x1x128x128xf32>
    %6 = vector.shape_cast %5 : vector<1x1x128x128xf32> to vector<128x128xf32>
    %7 = arith.truncf %6 : vector<128x128xf32> to vector<128x128xbf16>
    %c0_5 = arith.constant 0 : index
    %c0_6 = arith.constant 0 : index
    %8 = vector.load %arg9[%c0_5, %c0_6] : memref<128x128xf32, #tpu.memory_space<vmem>>, vector<128x128xf32>
    %c0_7 = arith.constant 0 : index
    %c0_8 = arith.constant 0 : index
    %c0_9 = arith.constant 0 : index
    %c0_10 = arith.constant 0 : index
    %9 = vector.load %arg5[%c0_7, %c0_8, %c0_9, %c0_10] : memref<1x1x128x128xbf16, #tpu.memory_space<vmem>>, vector<1x1x128x128xbf16>
    %10 = vector.shape_cast %9 : vector<1x1x128x128xbf16> to vector<128x128xbf16>
    %cst = arith.constant dense<0.000000e+00> : vector<128x128xf32>
    %11 = tpu.matmul %7, %10, %cst {dimension_numbers = #tpu.dot_dimension_numbers<[1], [0], [0], [1], [0, 0, 1, 1], [], []>} : vector<128x128xbf16>, vector<128x128xbf16>, vector<128x128xf32> -> vector<128x128xf32>
    %12 = arith.addf %8, %11 : vector<128x128xf32>
    %c0_11 = arith.constant 0 : index
    %c0_12 = arith.constant 0 : index
    %13 = vector.load %arg9[%c0_11, %c0_12] : memref<128x128xf32, #tpu.memory_space<vmem>>, vector<128x128xf32>
    tpu.vector_store %arg9[%c0_11, %c0_12], %12 {strides = array<i32>} : memref<128x128xf32, #tpu.memory_space<vmem>>, vector<128x128xf32>,
    %c2_i32 = arith.constant 2 : i32
    %14 = arith.cmpi eq, %arg2, %c2_i32 : i32
    %c0_i32_13 = arith.constant 0 : i32
    %15 = arith.cmpi eq, %arg3, %c0_i32_13 : i32
    %16 = arith.andi %14, %15 : i1
    %17 = arith.extui %16 : i1 to i32
    %c0_i32_14 = arith.constant 0 : i32
    %18 = arith.cmpi ne, %17, %c0_i32_14 : i32
    scf.if %18 {
      %c0_15 = arith.constant 0 : index
      %c0_16 = arith.constant 0 : index
      %19 = vector.load %arg9[%c0_15, %c0_16] : memref<128x128xf32, #tpu.memory_space<vmem>>, vector<128x128xf32>
      %cst_17 = arith.constant 0.000000e+00 : f32
      %20 = vector.broadcast %cst_17 : f32 to vector<128x128xf32>
      %21 = arith.maximumf %19, %20 : vector<128x128xf32>
      %c0_18 = arith.constant 0 : index
      %c0_19 = arith.constant 0 : index
      %c0_20 = arith.constant 0 : index
      %22 = vector.load %arg8[%c0_18, %c0_19, %c0_20] : memref<1x128x128xf32, #tpu.memory_space<vmem>>, vector<1x128x128xf32>
      %23 = vector.shape_cast %22 : vector<1x128x128xf32> to vector<128x128xf32>
      %24 = vector.shape_cast %21 : vector<128x128xf32> to vector<1x128x128xf32>
      tpu.vector_store %arg8[%c0_18, %c0_19, %c0_20], %24 {strides = array<i32>} : memref<1x128x128xf32, #tpu.memory_space<vmem>>, vector<1x128x128xf32>,
    } else {
    }
    return
  }
  func.func @transform_0(%arg0: i32, %arg1: i32, %arg2: i32, %arg3: i32) -> (i32, i32, i32, i32) {
    %c0_i32 = arith.constant 0 : i32
    return %arg0, %arg2, %arg1, %arg3 : i32, i32, i32, i32
  }
  func.func @transform_1(%arg0: i32, %arg1: i32, %arg2: i32, %arg3: i32) -> (i32, i32, i32, i32) {
    %c0_i32 = arith.constant 0 : i32
    %c0_i32_0 = arith.constant 0 : i32
    return %arg0, %arg2, %arg3, %c0_i32 : i32, i32, i32, i32
  }
  func.func @transform_2(%arg0: i32, %arg1: i32, %arg2: i32, %arg3: i32) -> (i32, i32, i32) {
    %c0_i32 = arith.constant 0 : i32
    %c0_i32_0 = arith.constant 0 : i32
    return %arg0, %arg1, %c0_i32 : i32, i32, i32
  }
  func.func @transform_3(%arg0: i32, %arg1: i32, %arg2: i32, %arg3: i32) -> (i32, i32) {
    %c0_i32 = arith.constant 0 : i32
    %c0_i32_0 = arith.constant 0 : i32
    %c0_i32_1 = arith.constant 0 : i32
    return %c0_i32, %c0_i32_0 : i32, i32
  }
  func.func @transform_4(%arg0: i32, %arg1: i32, %arg2: i32, %arg3: i32) -> (i32, i32, i32) {
    %c0_i32 = arith.constant 0 : i32
    %c0_i32_0 = arith.constant 0 : i32
    return %arg0, %arg1, %c0_i32 : i32, i32, i32
  }
}

</mosaic_0001>

<llo_original>
// kernel: tpu_custom_call.1
$region0: #{tpu_custom_call.1}
  #allocation0 [shape = 'u32[]', space=smem, size = 0x4, offset = 0x4, fixed_abs, tag = 'smem constant byte address 0x4 - core index']
  #allocation1 [shape = 'u32[144,128]{1,0:T(1,128)}', space=vmem, size = 0x12000, scoped, tag = 'internal scratch']
  #allocation2 [shape = 'f32[128,128]{1,0:T(8,128)}', space=vmem, size = 0x10000, scoped, tag = 'scratch operand']
  %s0 = inlined_call_operand.hbm [shape: f32[2,3,128,128], index: 0, kind: input, shape index: {}]
  %s1 = inlined_call_operand.hbm [shape: bf16[2,3,128,128], index: 1, kind: input, shape index: {}]
  %s2 = inlined_call_operand.vmem [shape: bf16[2,128,8], index: 2, kind: input, shape index: {}]
  %s3 = inlined_call_operand.vmem [shape: bf16[8,128], index: 3, kind: input, shape index: {}]
  %s4 = inlined_call_operand.hbm [shape: f32[2,128,128], index: 4, kind: output, shape index: {}]
  %s5 = sld [smem:[#allocation0]]
  $region65: #{tpu_custom_call.1} parent=0
    _
  %s7 = ssub.s32 1, %s5
  %s8 = scalar_select 0, %s7, %s5
  $region1: #{tpu_custom_call.1} parent=0
    #allocation3 [shape = 'u8[131072]{0}', space=vmem, size = 0x20000, scoped, tag = 'input window, operand 0']
    #allocation4 [shape = 's32[2]{0}', space=sflag, size = 0x8, scoped, tag = 'scoped memory for tpu_custom_call.1']
    #allocation5 [shape = 's32[2]{0}', space=sflag, size = 0x8, scoped, tag = 'scoped memory for tpu_custom_call.1']
    #allocation6 [shape = 'u8[65536]{0}', space=vmem, size = 0x10000, scoped, tag = 'input window, operand 1']
    #allocation7 [shape = 's32[2]{0}', space=sflag, size = 0x8, scoped, tag = 'scoped memory for tpu_custom_call.1']
    #allocation8 [shape = 'u8[131072]{0}', space=vmem, size = 0x20000, scoped, tag = 'output window, operand 0']
    %9 = vsyncpa [#allocation4], 0
    %s10 = scalar_lea.sflag [#allocation4], 1
    %11 = vsyncpa %s10, 0
    %12 = vsyncpa [#allocation7], 0
    %s13 = scalar_lea.sflag [#allocation7], 1
    %14 = vsyncpa %s13, 0
    %15 = vsyncpa [#allocation5], 0
    %s16 = scalar_lea.sflag [#allocation5], 1
    %17 = vsyncpa %s16, 0
    loop: start=0, step=1, limit=8
    $region2: #{tpu_custom_call.1} parent=1 // loop_pre_header
      _
    $region3: #{tpu_custom_call.1} parent=1 // loop_header
      %s19 = sphi 0, %s23
      %p20 = scmp.ge.s32.totalorder %s19, 8
      %s26 = sphi 0, %s52
      %s27 = sphi 0, %s48
      %s28 = sphi 0, %s44
      %s29 = sphi 0, %s40
      %s30 = sphi 0, %s26
      %s31 = sphi 0, %s27
      %s32 = sphi 0, %s28
      %s33 = sphi 0, %s29
      %s34 = sphi 0, %s30
      %s35 = sphi 0, %s31
      %s36 = sphi 0, %s32
      %s37 = sphi 0, %s33
      %s61 = sphi 0, %s63
      %s64 = sphi 0, %s61
      %s65 = sphi 0, %s64
      %s81 = sphi 0, %s65
      %s91 = sphi 0, %s93
      %s94 = sphi 0, %s91
      %s95 = sphi 0, %s94
      %s111 = sphi 0, %s95
      %s119 = sphi 0, %s121
      %s122 = sphi 0, %s119
      %s123 = sphi 0, %s122
      %s139 = sphi 0, %s123
      %s143 = sphi 0, %s143
      %s145 = sphi 0, %s143
      %s146 = sphi 0, %s145
      %s160 = sphi 0, %s146
      %s168 = sphi 0, %s170
      %s171 = sphi 0, %s168
      %s172 = sphi 0, %s171
      %s188 = sphi 0, %s172
    $region4: #{tpu_custom_call.1} parent=1 // loop_header_branch
      %22 = sbr.rel (%p20) target = $region8
    $region5: #{tpu_custom_call.1} parent=1 // loop_body
      %s24 = ssub.s32 %s19, 1
      %s25 = ssub.s32 %s19, 2
      %s38 = sadd.s32 1, %s29
      %p39 = scmp.ge.s32.totalorder %s38, 1
      %s40 = scalar_select %p39, 0, %s38
      %s41 = sadd.s32 1, %s28
      %s42 = scalar_select %p39, %s41, %s28
      %p43 = scmp.ge.s32.totalorder %s42, 3
      %s44 = scalar_select %p43, 0, %s42
      %s45 = sadd.s32 1, %s27
      %s46 = scalar_select %p43, %s45, %s27
      %p47 = scmp.ge.s32.totalorder %s46, 1
      %s48 = scalar_select %p47, 0, %s46
      %s49 = sadd.s32 1, %s26
      %s50 = scalar_select %p47, %s49, %s26
      %p51 = scmp.ge.s32.totalorder %s50, 2
      %s52 = scalar_select %p51, 0, %s50
      %s53 = ssub.s32 %s26, %s52
      %s54 = ssub.s32 %s28, %s44
      %s55 = sor.u32 %s53, %s54
      %s56 = ssub.s32 %s27, %s48
      %s57 = sor.u32 %s55, %s56
      %s58 = ssub.s32 %s29, %s40
      %s59 = sor.u32 %s57, %s58
      %p60 = scmp.eq.s32.totalorder %s59, 0
      %s62 = sadd.s32 %s61, 1
      %s63 = scalar_select %p60, %s61, %s62
      %p66 = pneg %p60
      %p67 = scmp.eq.s32.totalorder %s19, 5
      %p68 = por %p66, %p67
      %p69 = scmp.ne.s32.totalorder %s61, %s64
      %p70 = scmp.eq.s32.totalorder %s19, 0
      %p71 = por %p69, %p70
      %p72 = scmp.ne.s32.totalorder %s61, %s64
      %p73 = scmp.eq.s32.totalorder %s24, 5
      %p74 = por %p72, %p73
      %p75 = scmp.ne.s32.totalorder %s64, %s65
      %p76 = scmp.eq.s32.totalorder %s24, 0
      %p77 = por %p75, %p76
      %p78 = scmp.ne.s32.totalorder %s64, %s65
      %p79 = scmp.eq.s32.totalorder %s25, 5
      %p80 = por %p78, %p79
      %p82 = scmp.ne.s32.totalorder %s65, %s81
      %p83 = scmp.eq.s32.totalorder %s25, 0
      %p84 = por %p82, %p83
      %s85 = ssub.s32 %s26, %s52
      %s86 = ssub.s32 %s28, %s44
      %s87 = sor.u32 %s85, %s86
      %s88 = ssub.s32 %s29, %s40
      %s89 = sor.u32 %s87, %s88
      %p90 = scmp.eq.s32.totalorder %s89, 0
      %s92 = sadd.s32 %s91, 1
      %s93 = scalar_select %p90, %s91, %s92
      %p96 = pneg %p90
      %p97 = scmp.eq.s32.totalorder %s19, 5
      %p98 = por %p96, %p97
      %p99 = scmp.ne.s32.totalorder %s91, %s94
      %p100 = scmp.eq.s32.totalorder %s19, 0
      %p101 = por %p99, %p100
      %p102 = scmp.ne.s32.totalorder %s91, %s94
      %p103 = scmp.eq.s32.totalorder %s24, 5
      %p104 = por %p102, %p103
      %p105 = scmp.ne.s32.totalorder %s94, %s95
      %p106 = scmp.eq.s32.totalorder %s24, 0
      %p107 = por %p105, %p106
      %p108 = scmp.ne.s32.totalorder %s94, %s95
      %p109 = scmp.eq.s32.totalorder %s25, 5
      %p110 = por %p108, %p109
      %p112 = scmp.ne.s32.totalorder %s95, %s111
      %p113 = scmp.eq.s32.totalorder %s25, 0
      %p114 = por %p112, %p113
      %s115 = ssub.s32 %s26, %s52
      %s116 = ssub.s32 %s27, %s48
      %s117 = sor.u32 %s115, %s116
      %p118 = scmp.eq.s32.totalorder %s117, 0
      %s120 = sadd.s32 %s119, 1
      %s121 = scalar_select %p118, %s119, %s120
      %p124 = pneg %p118
      %p125 = scmp.eq.s32.totalorder %s19, 5
      %p126 = por %p124, %p125
      %p127 = scmp.ne.s32.totalorder %s119, %s122
      %p128 = scmp.eq.s32.totalorder %s19, 0
      %p129 = por %p127, %p128
      %p130 = scmp.ne.s32.totalorder %s119, %s122
      %p131 = scmp.eq.s32.totalorder %s24, 5
      %p132 = por %p130, %p131
      %p133 = scmp.ne.s32.totalorder %s122, %s123
      %p134 = scmp.eq.s32.totalorder %s24, 0
      %p135 = por %p133, %p134
      %p136 = scmp.ne.s32.totalorder %s122, %s123
      %p137 = scmp.eq.s32.totalorder %s25, 5
      %p138 = por %p136, %p137
      %p140 = scmp.ne.s32.totalorder %s123, %s139
      %p141 = scmp.eq.s32.totalorder %s25, 0
      %p142 = por %p140, %p141
      %s144 = sadd.s32 %s143, 1
      %p147 = scmp.eq.s32.totalorder %s19, 5
      %p148 = scmp.ne.s32.totalorder %s143, %s145
      %p149 = scmp.eq.s32.totalorder %s19, 0
      %p150 = por %p148, %p149
      %p151 = scmp.ne.s32.totalorder %s143, %s145
      %p152 = scmp.eq.s32.totalorder %s24, 5
      %p153 = por %p151, %p152
      %p154 = scmp.ne.s32.totalorder %s145, %s146
      %p155 = scmp.eq.s32.totalorder %s24, 0
      %p156 = por %p154, %p155
      %p157 = scmp.ne.s32.totalorder %s145, %s146
      %p158 = scmp.eq.s32.totalorder %s25, 5
      %p159 = por %p157, %p158
      %p161 = scmp.ne.s32.totalorder %s146, %s160
      %p162 = scmp.eq.s32.totalorder %s25, 0
      %p163 = por %p161, %p162
      %s164 = ssub.s32 %s26, %s52
      %s165 = ssub.s32 %s27, %s48
      %s166 = sor.u32 %s164, %s165
      %p167 = scmp.eq.s32.totalorder %s166, 0
      %s169 = sadd.s32 %s168, 1
      %s170 = scalar_select %p167, %s168, %s169
      %p173 = pneg %p167
      %p174 = scmp.eq.s32.totalorder %s19, 5
      %p175 = por %p173, %p174
      %p176 = scmp.ne.s32.totalorder %s168, %s171
      %p177 = scmp.eq.s32.totalorder %s19, 0
      %p178 = por %p176, %p177
      %p179 = scmp.ne.s32.totalorder %s168, %s171
      %p180 = scmp.eq.s32.totalorder %s24, 5
      %p181 = por %p179, %p180
      %p182 = scmp.ne.s32.totalorder %s171, %s172
      %p183 = scmp.eq.s32.totalorder %s24, 0
      %p184 = por %p182, %p183
      %p185 = scmp.ne.s32.totalorder %s171, %s172
      %p186 = scmp.eq.s32.totalorder %s25, 5
      %p187 = por %p185, %p186
      %p189 = scmp.ne.s32.totalorder %s172, %s188
      %p190 = scmp.eq.s32.totalorder %s25, 0
      %p191 = por %p189, %p190
      %p192 = scmp.le.s32.totalorder 1, %s19
      %p193 = scmp.lt.s32.totalorder %s19, 7
      %p194 = pnand %p192, %p193
      %p195 = pneg %p194
      // Predicated region
      $region9: #{tpu_custom_call.1} parent=5 // pred_check
        _
      $region10: #{tpu_custom_call.1} parent=5 // pred_check_branch
        %197 = sbr.rel (%p194) target = $region12
      $region11: #{tpu_custom_call.1} parent=5 // pred_region
        %s198 = ssub.s32 %s19, 1
        // Predicated region
        $region13: #{tpu_custom_call.1} parent=11 // pred_check
          %p199 = pneg %p156
        $region14: #{tpu_custom_call.1} parent=11 // pred_check_branch
          %201 = sbr.rel (%p199) target = $region16
        $region15: #{tpu_custom_call.1} parent=11 // pred_region
          _
        $region16: #{tpu_custom_call.1} parent=11 // pred_fallthru
          _
      $region12: #{tpu_custom_call.1} parent=5 // pred_fallthru
        _
      %p202 = scmp.lt.s32.totalorder %s19, 6
      // Predicated region
      $region17: #{tpu_custom_call.1} parent=5 // pred_check
        %p203 = pneg %p202
      $region18: #{tpu_custom_call.1} parent=5 // pred_check_branch
        %205 = sbr.rel (%p203) target = $region20
      $region19: #{tpu_custom_call.1} parent=5 // pred_region
        // Predicated region
        $region21: #{tpu_custom_call.1} parent=19 // pred_check
          %p206 = pneg %p71
        $region22: #{tpu_custom_call.1} parent=19 // pred_check_branch
          %208 = sbr.rel (%p206) target = $region24
        $region23: #{tpu_custom_call.1} parent=19 // pred_region
          %s209 = sand.u32 %s61, 1
          %s210 = scalar_lea.sflag [#allocation4], %s209
          %s211 = sand.u32 %s61, 1
          %s212 = smul.addr %s211, 128
          %s213 = scalar_lea.vmem [#allocation3], %s212
          %s214 = smul.u32 16, %s27
          %s216 = ssub.s32 2048, 2048
          %217 = vsyncadd %s210, %s216
          %s218 = sadd.s32 %s29, %s214
          %s219 = smul.addr %s28, 16
          %s220 = sadd.s32 %s218, %s219
          %s221 = smul.addr %s26, 48
          %s222 = sadd.s32 %s220, %s221
          %s223 = smul.addr %s222, 128
          %s224 = scalar_lea.hbm %s0, %s223
          %s225 = sshll.u32 %s213, 4
          %s226 = int_to_ptr.vmem [resolvable:$true] %s225
          %231 = dma.hbm_to_vmem [thread:$0]  %s224, 2048, %s226, %s210, 128, 128, 8
        $region24: #{tpu_custom_call.1} parent=19 // pred_fallthru
          _
        // Predicated region
        $region25: #{tpu_custom_call.1} parent=19 // pred_check
          %p232 = pneg %p101
        $region26: #{tpu_custom_call.1} parent=19 // pred_check_branch
          %234 = sbr.rel (%p232) target = $region28
        $region27: #{tpu_custom_call.1} parent=19 // pred_region
          %s235 = sand.u32 %s91, 1
          %s236 = scalar_lea.sflag [#allocation7], %s235
          %s237 = sand.u32 %s91, 1
          %s238 = smul.addr %s237, 64
          %s239 = scalar_lea.vmem [#allocation6], %s238
          %s240 = smul.u32 16, %s29
          %s242 = ssub.s32 1024, 1024
          %243 = vsyncadd %s236, %s242
          %s244 = smul.addr %s28, 16
          %s245 = sadd.s32 %s240, %s244
          %s246 = smul.addr %s26, 48
          %s247 = sadd.s32 %s245, %s246
          %s248 = smul.addr %s247, 64
          %s249 = scalar_lea.hbm %s1, %s248
          %s250 = sshll.u32 %s239, 4
          %s251 = int_to_ptr.vmem [resolvable:$true] %s250
          %256 = dma.hbm_to_vmem [thread:$0]  %s249, 1024, %s251, %s236, 64, 64, 4
        $region28: #{tpu_custom_call.1} parent=19 // pred_fallthru
          _
        // Predicated region
        $region29: #{tpu_custom_call.1} parent=19 // pred_check
          %p257 = pneg %p129
        $region30: #{tpu_custom_call.1} parent=19 // pred_check_branch
          %259 = sbr.rel (%p257) target = $region32
        $region31: #{tpu_custom_call.1} parent=19 // pred_region
          %s260 = smul.u32 16, %s27
          %p261 = scmp.lt.s32.totalorder %s26, 1
          %s262 = scalar_select %p261, %s26, 1
          %p263 = scmp.lt.s32.totalorder %s260, 15
          %s264 = scalar_select %p263, %s260, 15
          %s265 = smul.addr %s262, 16
          %s266 = sadd.s32 %s264, %s265
          %s267 = smul.addr %s266, 4
          %s268 = scalar_lea.vmem %s2, %s267
          %s269 = smul.u32 16, %s27
        $region32: #{tpu_custom_call.1} parent=19 // pred_fallthru
          _
      $region20: #{tpu_custom_call.1} parent=5 // pred_fallthru
        _
      %p270 = scmp.le.s32.totalorder 1, %s19
      %p271 = scmp.lt.s32.totalorder %s19, 7
      %p272 = pnand %p270, %p271
      %p273 = pneg %p272
      // Predicated region
      $region33: #{tpu_custom_call.1} parent=5 // pred_check
        _
      $region34: #{tpu_custom_call.1} parent=5 // pred_check_branch
        %275 = sbr.rel (%p272) target = $region36
      $region35: #{tpu_custom_call.1} parent=5 // pred_region
        %s276 = ssub.s32 %s19, 1
        %s277 = sand.u32 %s64, 1
        %s278 = scalar_lea.sflag [#allocation4], %s277
        %s279 = sand.u32 %s64, 1
        %s280 = smul.addr %s279, 128
        %s281 = scalar_lea.vmem [#allocation3], %s280
        // Predicated region
        $region37: #{tpu_custom_call.1} parent=35 // pred_check
          %p282 = pneg %p77
        $region38: #{tpu_custom_call.1} parent=35 // pred_check_branch
          %284 = sbr.rel (%p282) target = $region40
        $region39: #{tpu_custom_call.1} parent=35 // pred_region
          %285 = dma.done %s278, 2048
        $region40: #{tpu_custom_call.1} parent=35 // pred_fallthru
          _
        %s286 = sand.u32 %s94, 1
        %s287 = scalar_lea.sflag [#allocation7], %s286
        %s288 = sand.u32 %s94, 1
        %s289 = smul.addr %s288, 64
        %s290 = scalar_lea.vmem [#allocation6], %s289
        // Predicated region
        $region41: #{tpu_custom_call.1} parent=35 // pred_check
          %p291 = pneg %p107
        $region42: #{tpu_custom_call.1} parent=35 // pred_check_branch
          %293 = sbr.rel (%p291) target = $region44
        $region43: #{tpu_custom_call.1} parent=35 // pred_region
          %294 = dma.done %s287, 1024
        $region44: #{tpu_custom_call.1} parent=35 // pred_fallthru
          _
        %s295 = sand.u32 %s64, 1
        %s296 = scalar_lea.sflag [#allocation4], %s295
        %s297 = sand.u32 %s64, 1
        %s298 = smul.addr %s297, 128
        %s299 = scalar_lea.vmem [#allocation3], %s298
        %p300 = pneg %p77
        %p301 = pneg %p74
        %s302 = sand.u32 %s94, 1
        %s303 = scalar_lea.sflag [#allocation7], %s302
        %s304 = sand.u32 %s94, 1
        %s305 = smul.addr %s304, 64
        %s306 = scalar_lea.vmem [#allocation6], %s305
        %p307 = pneg %p107
        %p308 = pneg %p104
        %s309 = smul.u32 16, %s31
        %p310 = scmp.lt.s32.totalorder %s30, 1
        %s311 = scalar_select %p310, %s30, 1
        %p312 = scmp.lt.s32.totalorder %s309, 15
        %s313 = scalar_select %p312, %s309, 15
        %s314 = smul.addr %s311, 16
        %s315 = sadd.s32 %s313, %s314
        %s316 = smul.addr %s315, 4
        %s317 = scalar_lea.vmem %s2, %s316
        %p318 = pneg %p135
        %p319 = pneg %p132
        %p320 = pneg %p156
        %p321 = pneg %p153
        %p322 = pneg %p184
        %p323 = pneg %p181
        %s324 = sand.u32 %s171, 1
        %s325 = scalar_lea.sflag [#allocation5], %s324
        %s326 = sand.u32 %s171, 1
        %s327 = smul.addr %s326, 128
        %s328 = scalar_lea.vmem [#allocation8], %s327
        %s329 = smul.u32 16, %s31
        %s330 = smul.u32 16, %s33
        %s331 = smul.u32 16, %s31
        %p332 = scmp.lt.s32.totalorder %s30, 1
        %s333 = scalar_select %p332, %s30, 1
        %p334 = scmp.lt.s32.totalorder %s331, 15
        %s335 = scalar_select %p334, %s331, 15
        %s336 = smul.addr %s333, 16
        %s337 = sadd.s32 %s335, %s336
        %s338 = smul.addr %s337, 4
        %s339 = scalar_lea.vmem %s2, %s338
        %s340 = smul.u32 16, %s31
        %s341 = smul.u32 16, %s31
        %p343 = scmp.eq.s32.totalorder %s32, 0
        %p344 = scmp.eq.s32.totalorder %s33, 0
        %p345 = pnand %p343, %p344
        %p346 = pneg %p345
        // Predicated region
        $region45: #{tpu_custom_call.1} parent=35 // pred_check
          _
        $region46: #{tpu_custom_call.1} parent=35 // pred_check_branch
          %348 = sbr.rel (%p345) target = $region48
        $region47: #{tpu_custom_call.1} parent=35 // pred_region
          %v349 = vld [vmem:[%s339] sm:$0xf]
          %v350 = vld [vmem:[%s339 + $0x4] sm:$0xf]
          %v351 = vld [vmem:[%s339 + $0x8] sm:$0xf]
          %v352 = vld [vmem:[%s339 + $0xc] sm:$0xf]
          %v353 = vld [vmem:[%s339 + $0x10] sm:$0xf]
          %v354 = vld [vmem:[%s339 + $0x14] sm:$0xf]
          %v355 = vld [vmem:[%s339 + $0x18] sm:$0xf]
          %v356 = vld [vmem:[%s339 + $0x1c] sm:$0xf]
          %v357 = vld [vmem:[%s339 + $0x20] sm:$0xf]
          %v358 = vld [vmem:[%s339 + $0x24] sm:$0xf]
          %v359 = vld [vmem:[%s339 + $0x28] sm:$0xf]
          %v360 = vld [vmem:[%s339 + $0x2c] sm:$0xf]
          %v361 = vld [vmem:[%s339 + $0x30] sm:$0xf]
          %v362 = vld [vmem:[%s339 + $0x34] sm:$0xf]
          %v363 = vld [vmem:[%s339 + $0x38] sm:$0xf]
          %v364 = vld [vmem:[%s339 + $0x3c] sm:$0xf]
          %v365 = vld [vmem:[%s3] sm:$0xf]
          %v382 = vunpack.c.l.b16 %v349
          %v383 = vunpack.c.l.b16 %v350
          %v384 = vunpack.c.l.b16 %v351
          %v385 = vunpack.c.l.b16 %v352
          %v386 = vunpack.c.l.b16 %v353
          %v387 = vunpack.c.l.b16 %v354
          %v388 = vunpack.c.l.b16 %v355
          %v389 = vunpack.c.l.b16 %v356
          %v390 = vunpack.c.l.b16 %v357
          %v391 = vunpack.c.l.b16 %v358
          %v392 = vunpack.c.l.b16 %v359
          %v393 = vunpack.c.l.b16 %v360
          %v394 = vunpack.c.l.b16 %v361
          %v395 = vunpack.c.l.b16 %v362
          %v396 = vunpack.c.l.b16 %v363
          %v397 = vunpack.c.l.b16 %v364
          %v398 = vpack.c.b16 %v383, %v382
          %v399 = vpack.c.b16 %v385, %v384
          %v400 = vpack.c.b16 %v387, %v386
          %v401 = vpack.c.b16 %v389, %v388
          %v402 = vpack.c.b16 %v391, %v390
          %v403 = vpack.c.b16 %v393, %v392
          %v404 = vpack.c.b16 %v395, %v394
          %v405 = vpack.c.b16 %v397, %v396
          %vm406 = vcmask 64512
          %v408 = vsel %vm406, %v398, 0
          %v411 = vsel %vm406, %v399, 0
          %v414 = vsel %vm406, %v400, 0
          %v417 = vsel %vm406, %v401, 0
          %v420 = vsel %vm406, %v402, 0
          %v423 = vsel %vm406, %v403, 0
          %v426 = vsel %vm406, %v404, 0
          %v429 = vsel %vm406, %v405, 0
          %vm431 = vcmask 1043456
          %v433 = vsel %vm431, %v365, 0
          %435 = vmatprep.subr.bf16.mxu0 0
          %436 = vmatpush1.bf16.msra.mxu0 %v433
          %437 = vmatprep.subr.bf16.mxu0 0
          %438 = vmatpush1.bf16.msra.mxu0 0
          %439 = vmatprep.subr.bf16.mxu0 0
          %440 = vmatpush1.bf16.msra.mxu0 0
          %441 = vmatprep.subr.bf16.mxu0 0
          %442 = vmatpush1.bf16.msra.mxu0 0
          %443 = vmatprep.subr.bf16.mxu0 0
          %444 = vmatpush1.bf16.msra.mxu0 0
          %445 = vmatprep.subr.bf16.mxu0 0
          %446 = vmatpush1.bf16.msra.mxu0 0
          %447 = vmatprep.subr.bf16.mxu0 0
          %448 = vmatpush1.bf16.msra.mxu0 0
          %449 = vmatprep.subr.bf16.mxu0 0
          %450 = vmatpush1.bf16.msra.mxu0 0
          %451 = vmatprep.subr.bf16.mxu0 0
          %452 = vmatpush1.bf16.msra.mxu0 0
          %453 = vmatprep.subr.bf16.mxu0 0
          %454 = vmatpush1.bf16.msra.mxu0 0
          %455 = vmatprep.subr.bf16.mxu0 0
          %456 = vmatpush1.bf16.msra.mxu0 0
          %457 = vmatprep.subr.bf16.mxu0 0
          %458 = vmatpush1.bf16.msra.mxu0 0
          %459 = vmatprep.subr.bf16.mxu0 0
          %460 = vmatpush1.bf16.msra.mxu0 0
          %461 = vmatprep.subr.bf16.mxu0 0
          %462 = vmatpush1.bf16.msra.mxu0 0
          %463 = vmatprep.subr.bf16.mxu0 0
          %464 = vmatpush1.bf16.msra.mxu0 0
          %465 = vmatprep.subr.bf16.mxu0 0
          %466 = vmatpush1.bf16.msra.mxu0 0
          %467 = vmatprep.mubr.bf16.mxu0 0
          %468 = vmatmul.mubr.bf16.gmra.mrb[0].mxu0 %v408
          %v469 = vpop.f32.mrb[0].mxu0
          %v470 = vadd.f32 0.0, %v469
          %v471 = vpop.f32.mrb[0].mxu0
          %v472 = vpop.f32.mrb[0].mxu0
          %v473 = vadd.f32 0.0, %v472
          %v474 = vpop.f32.mrb[0].mxu0
          %475 = vmatprep.mubr.bf16.mxu0 0
          %476 = vmatmul.mubr.bf16.gmra.mrb[0].mxu0 %v411
          %v477 = vpop.f32.mrb[0].mxu0
          %v478 = vadd.f32 0.0, %v477
          %v479 = vpop.f32.mrb[0].mxu0
          %v480 = vpop.f32.mrb[0].mxu0
          %v481 = vadd.f32 0.0, %v480
          %v482 = vpop.f32.mrb[0].mxu0
          %483 = vmatprep.mubr.bf16.mxu0 0
          %484 = vmatmul.mubr.bf16.gmra.mrb[0].mxu0 %v414
          %v485 = vpop.f32.mrb[0].mxu0
          %v486 = vadd.f32 0.0, %v485
          %v487 = vpop.f32.mrb[0].mxu0
          %v488 = vpop.f32.mrb[0].mxu0
          %v489 = vadd.f32 0.0, %v488
          %v490 = vpop.f32.mrb[0].mxu0
          %491 = vmatprep.mubr.bf16.mxu0 0
          %492 = vmatmul.mubr.bf16.gmra.mrb[0].mxu0 %v417
          %v493 = vpop.f32.mrb[0].mxu0
          %v494 = vadd.f32 0.0, %v493
          %v495 = vpop.f32.mrb[0].mxu0
          %v496 = vpop.f32.mrb[0].mxu0
          %v497 = vadd.f32 0.0, %v496
          %v498 = vpop.f32.mrb[0].mxu0
          %499 = vmatprep.mubr.bf16.mxu0 0
          %500 = vmatmul.mubr.bf16.gmra.mrb[0].mxu0 %v420
          %v501 = vpop.f32.mrb[0].mxu0
          %v502 = vadd.f32 0.0, %v501
          %v503 = vpop.f32.mrb[0].mxu0
          %v504 = vpop.f32.mrb[0].mxu0
          %v505 = vadd.f32 0.0, %v504
          %v506 = vpop.f32.mrb[0].mxu0
          %507 = vmatprep.mubr.bf16.mxu0 0
          %508 = vmatmul.mubr.bf16.gmra.mrb[0].mxu0 %v423
          %v509 = vpop.f32.mrb[0].mxu0
          %v510 = vadd.f32 0.0, %v509
          %v511 = vpop.f32.mrb[0].mxu0
          %v512 = vpop.f32.mrb[0].mxu0
          %v513 = vadd.f32 0.0, %v512
          %v514 = vpop.f32.mrb[0].mxu0
          %515 = vmatprep.mubr.bf16.mxu0 0
          %516 = vmatmul.mubr.bf16.gmra.mrb[0].mxu0 %v426
          %v517 = vpop.f32.mrb[0].mxu0
          %v518 = vadd.f32 0.0, %v517
          %v519 = vpop.f32.mrb[0].mxu0
          %v520 = vpop.f32.mrb[0].mxu0
          %v521 = vadd.f32 0.0, %v520
          %v522 = vpop.f32.mrb[0].mxu0
          %523 = vmatprep.mubr.bf16.mxu0 0
          %524 = vmatmul.mubr.bf16.gmra.mrb[0].mxu0 %v429
          %v525 = vpop.f32.mrb[0].mxu0
          %v526 = vadd.f32 0.0, %v525
          %v527 = vpop.f32.mrb[0].mxu0
          %v528 = vpop.f32.mrb[0].mxu0
          %v529 = vadd.f32 0.0, %v528
          %v530 = vpop.f32.mrb[0].mxu0
          %531 = vdwg.mxu0
          %532 = vst [vmem:[#allocation2] sm:$0xff] %v470
          %533 = vst [vmem:[#allocation2 + $0x8] sm:$0xff] %v473
          %534 = vst [vmem:[#allocation2 + $0x10] sm:$0xff] %v478
          %535 = vst [vmem:[#allocation2 + $0x18] sm:$0xff] %v481
          %536 = vst [vmem:[#allocation2 + $0x20] sm:$0xff] %v486
          %537 = vst [vmem:[#allocation2 + $0x28] sm:$0xff] %v489
          %538 = vst [vmem:[#allocation2 + $0x30] sm:$0xff] %v494
          %539 = vst [vmem:[#allocation2 + $0x38] sm:$0xff] %v497
          %540 = vst [vmem:[#allocation2 + $0x40] sm:$0xff] %v502
          %541 = vst [vmem:[#allocation2 + $0x48] sm:$0xff] %v505
          %542 = vst [vmem:[#allocation2 + $0x50] sm:$0xff] %v510
          %543 = vst [vmem:[#allocation2 + $0x58] sm:$0xff] %v513
          %544 = vst [vmem:[#allocation2 + $0x60] sm:$0xff] %v518
          %545 = vst [vmem:[#allocation2 + $0x68] sm:$0xff] %v521
          %546 = vst [vmem:[#allocation2 + $0x70] sm:$0xff] %v526
          %547 = vst [vmem:[#allocation2 + $0x78] sm:$0xff] %v529
        $region48: #{tpu_custom_call.1} parent=35 // pred_fallthru
          _
        %v548 = vld [vmem:[%s281] sm:$0xff]
        %v549 = vld [vmem:[%s281 + $0x8] sm:$0xff]
        %v550 = vld [vmem:[%s281 + $0x10] sm:$0xff]
        %v551 = vld [vmem:[%s281 + $0x18] sm:$0xff]
        %v552 = vld [vmem:[%s281 + $0x20] sm:$0xff]
        %v553 = vld [vmem:[%s281 + $0x28] sm:$0xff]
        %v554 = vld [vmem:[%s281 + $0x30] sm:$0xff]
        %v555 = vld [vmem:[%s281 + $0x38] sm:$0xff]
        %v556 = vld [vmem:[%s281 + $0x40] sm:$0xff]
        %v557 = vld [vmem:[%s281 + $0x48] sm:$0xff]
        %v558 = vld [vmem:[%s281 + $0x50] sm:$0xff]
        %v559 = vld [vmem:[%s281 + $0x58] sm:$0xff]
        %v560 = vld [vmem:[%s281 + $0x60] sm:$0xff]
        %v561 = vld [vmem:[%s281 + $0x68] sm:$0xff]
        %v562 = vld [vmem:[%s281 + $0x70] sm:$0xff]
        %v563 = vld [vmem:[%s281 + $0x78] sm:$0xff]
        %v564 = vpack.c.bf16 %v549, %v548
        %v565 = vpack.c.bf16 %v551, %v550
        %v566 = vpack.c.bf16 %v553, %v552
        %v567 = vpack.c.bf16 %v555, %v554
        %v568 = vpack.c.bf16 %v557, %v556
        %v569 = vpack.c.bf16 %v559, %v558
        %v570 = vpack.c.bf16 %v561, %v560
        %v571 = vpack.c.bf16 %v563, %v562
        %v572 = vld [vmem:[#allocation2] sm:$0xff]
        %v573 = vld [vmem:[#allocation2 + $0x8] sm:$0xff]
        %v574 = vld [vmem:[#allocation2 + $0x10] sm:$0xff]
        %v575 = vld [vmem:[#allocation2 + $0x18] sm:$0xff]
        %v576 = vld [vmem:[#allocation2 + $0x20] sm:$0xff]
        %v577 = vld [vmem:[#allocation2 + $0x28] sm:$0xff]
        %v578 = vld [vmem:[#allocation2 + $0x30] sm:$0xff]
        %v579 = vld [vmem:[#allocation2 + $0x38] sm:$0xff]
        %v580 = vld [vmem:[#allocation2 + $0x40] sm:$0xff]
        %v581 = vld [vmem:[#allocation2 + $0x48] sm:$0xff]
        %v582 = vld [vmem:[#allocation2 + $0x50] sm:$0xff]
        %v583 = vld [vmem:[#allocation2 + $0x58] sm:$0xff]
        %v584 = vld [vmem:[#allocation2 + $0x60] sm:$0xff]
        %v585 = vld [vmem:[#allocation2 + $0x68] sm:$0xff]
        %v586 = vld [vmem:[#allocation2 + $0x70] sm:$0xff]
        %v587 = vld [vmem:[#allocation2 + $0x78] sm:$0xff]
        %v588 = vld [vmem:[%s290] sm:$0xf]
        %v589 = vld [vmem:[%s290 + $0x4] sm:$0xf]
        %v590 = vld [vmem:[%s290 + $0x8] sm:$0xf]
        %v591 = vld [vmem:[%s290 + $0xc] sm:$0xf]
        %v592 = vld [vmem:[%s290 + $0x10] sm:$0xf]
        %v593 = vld [vmem:[%s290 + $0x14] sm:$0xf]
        %v594 = vld [vmem:[%s290 + $0x18] sm:$0xf]
        %v595 = vld [vmem:[%s290 + $0x1c] sm:$0xf]
        %v596 = vld [vmem:[%s290 + $0x20] sm:$0xf]
        %v597 = vld [vmem:[%s290 + $0x24] sm:$0xf]
        %v598 = vld [vmem:[%s290 + $0x28] sm:$0xf]
        %v599 = vld [vmem:[%s290 + $0x2c] sm:$0xf]
        %v600 = vld [vmem:[%s290 + $0x30] sm:$0xf]
        %v601 = vld [vmem:[%s290 + $0x34] sm:$0xf]
        %v602 = vld [vmem:[%s290 + $0x38] sm:$0xf]
        %v603 = vld [vmem:[%s290 + $0x3c] sm:$0xf]
        %v620 = vunpack.c.l.b16 %v588
        %v621 = vunpack.c.l.b16 %v589
        %v622 = vunpack.c.l.b16 %v590
        %v623 = vunpack.c.l.b16 %v591
        %v624 = vunpack.c.l.b16 %v592
        %v625 = vunpack.c.l.b16 %v593
        %v626 = vunpack.c.l.b16 %v594
        %v627 = vunpack.c.l.b16 %v595
        %v628 = vunpack.c.l.b16 %v596
        %v629 = vunpack.c.l.b16 %v597
        %v630 = vunpack.c.l.b16 %v598
        %v631 = vunpack.c.l.b16 %v599
        %v632 = vunpack.c.l.b16 %v600
        %v633 = vunpack.c.l.b16 %v601
        %v634 = vunpack.c.l.b16 %v602
        %v635 = vunpack.c.l.b16 %v603
        %v636 = vpack.c.b16 %v621, %v620
        %v637 = vpack.c.b16 %v623, %v622
        %v638 = vpack.c.b16 %v625, %v624
        %v639 = vpack.c.b16 %v627, %v626
        %v640 = vpack.c.b16 %v629, %v628
        %v641 = vpack.c.b16 %v631, %v630
        %v642 = vpack.c.b16 %v633, %v632
        %v643 = vpack.c.b16 %v635, %v634
        %652 = vmatprep.subr.bf16.mxu0 0
        %653 = vmatpush1.bf16.msra.mxu0 %v636
        %654 = vmatprep.subr.bf16.mxu0 0
        %655 = vmatpush1.bf16.msra.mxu0 %v637
        %656 = vmatprep.subr.bf16.mxu0 0
        %657 = vmatpush1.bf16.msra.mxu0 %v638
        %658 = vmatprep.subr.bf16.mxu0 0
        %659 = vmatpush1.bf16.msra.mxu0 %v639
        %660 = vmatprep.subr.bf16.mxu0 0
        %661 = vmatpush1.bf16.msra.mxu0 %v640
        %662 = vmatprep.subr.bf16.mxu0 0
        %663 = vmatpush1.bf16.msra.mxu0 %v641
        %664 = vmatprep.subr.bf16.mxu0 0
        %665 = vmatpush1.bf16.msra.mxu0 %v642
        %666 = vmatprep.subr.bf16.mxu0 0
        %667 = vmatpush1.bf16.msra.mxu0 %v643
        %668 = vmatprep.subr.bf16.mxu0 0
        %669 = vmatpush1.bf16.msra.mxu0 0
        %670 = vmatprep.subr.bf16.mxu0 0
        %671 = vmatpush1.bf16.msra.mxu0 0
        %672 = vmatprep.subr.bf16.mxu0 0
        %673 = vmatpush1.bf16.msra.mxu0 0
        %674 = vmatprep.subr.bf16.mxu0 0
        %675 = vmatpush1.bf16.msra.mxu0 0
        %676 = vmatprep.subr.bf16.mxu0 0
        %677 = vmatpush1.bf16.msra.mxu0 0
        %678 = vmatprep.subr.bf16.mxu0 0
        %679 = vmatpush1.bf16.msra.mxu0 0
        %680 = vmatprep.subr.bf16.mxu0 0
        %681 = vmatpush1.bf16.msra.mxu0 0
        %682 = vmatprep.subr.bf16.mxu0 0
        %683 = vmatpush1.bf16.msra.mxu0 0
        %684 = vmatprep.mubr.bf16.mxu0 0
        %685 = vmatmul.mubr.bf16.gmra.mrb[0].mxu0 %v564
        %v686 = vpop.f32.mrb[0].mxu0
        %v687 = vadd.f32 0.0, %v686
        %v688 = vpop.f32.mrb[0].mxu0
        %v689 = vpop.f32.mrb[0].mxu0
        %v690 = vadd.f32 0.0, %v689
        %v691 = vpop.f32.mrb[0].mxu0
        %692 = vmatprep.mubr.bf16.mxu0 0
        %693 = vmatmul.mubr.bf16.gmra.mrb[0].mxu0 %v565
        %v694 = vpop.f32.mrb[0].mxu0
        %v695 = vadd.f32 0.0, %v694
        %v696 = vpop.f32.mrb[0].mxu0
        %v697 = vpop.f32.mrb[0].mxu0
        %v698 = vadd.f32 0.0, %v697
        %v699 = vpop.f32.mrb[0].mxu0
        %700 = vmatprep.mubr.bf16.mxu0 0
        %701 = vmatmul.mubr.bf16.gmra.mrb[0].mxu0 %v566
        %v702 = vpop.f32.mrb[0].mxu0
        %v703 = vadd.f32 0.0, %v702
        %v704 = vpop.f32.mrb[0].mxu0
        %v705 = vpop.f32.mrb[0].mxu0
        %v706 = vadd.f32 0.0, %v705
        %v707 = vpop.f32.mrb[0].mxu0
        %708 = vmatprep.mubr.bf16.mxu0 0
        %709 = vmatmul.mubr.bf16.gmra.mrb[0].mxu0 %v567
        %v710 = vpop.f32.mrb[0].mxu0
        %v711 = vadd.f32 0.0, %v710
        %v712 = vpop.f32.mrb[0].mxu0
        %v713 = vpop.f32.mrb[0].mxu0
        %v714 = vadd.f32 0.0, %v713
        %v715 = vpop.f32.mrb[0].mxu0
        %716 = vmatprep.mubr.bf16.mxu0 0
        %717 = vmatmul.mubr.bf16.gmra.mrb[0].mxu0 %v568
        %v718 = vpop.f32.mrb[0].mxu0
        %v719 = vadd.f32 0.0, %v718
        %v720 = vpop.f32.mrb[0].mxu0
        %v721 = vpop.f32.mrb[0].mxu0
        %v722 = vadd.f32 0.0, %v721
        %v723 = vpop.f32.mrb[0].mxu0
        %724 = vmatprep.mubr.bf16.mxu0 0
        %725 = vmatmul.mubr.bf16.gmra.mrb[0].mxu0 %v569
        %v726 = vpop.f32.mrb[0].mxu0
        %v727 = vadd.f32 0.0, %v726
        %v728 = vpop.f32.mrb[0].mxu0
        %v729 = vpop.f32.mrb[0].mxu0
        %v730 = vadd.f32 0.0, %v729
        %v731 = vpop.f32.mrb[0].mxu0
        %732 = vmatprep.mubr.bf16.mxu0 0
        %733 = vmatmul.mubr.bf16.gmra.mrb[0].mxu0 %v570
        %v734 = vpop.f32.mrb[0].mxu0
        %v735 = vadd.f32 0.0, %v734
        %v736 = vpop.f32.mrb[0].mxu0
        %v737 = vpop.f32.mrb[0].mxu0
        %v738 = vadd.f32 0.0, %v737
        %v739 = vpop.f32.mrb[0].mxu0
        %740 = vmatprep.mubr.bf16.mxu0 0
        %741 = vmatmul.mubr.bf16.gmra.mrb[0].mxu0 %v571
        %v742 = vpop.f32.mrb[0].mxu0
        %v743 = vadd.f32 0.0, %v742
        %v744 = vpop.f32.mrb[0].mxu0
        %v745 = vpop.f32.mrb[0].mxu0
        %v746 = vadd.f32 0.0, %v745
        %v747 = vpop.f32.mrb[0].mxu0
        %748 = vdwg.mxu0
        %v749 = vadd.f32 %v572, %v687
        %v750 = vadd.f32 %v573, %v690
        %v751 = vadd.f32 %v574, %v695
        %v752 = vadd.f32 %v575, %v698
        %v753 = vadd.f32 %v576, %v703
        %v754 = vadd.f32 %v577, %v706
        %v755 = vadd.f32 %v578, %v711
        %v756 = vadd.f32 %v579, %v714
        %v757 = vadd.f32 %v580, %v719
        %v758 = vadd.f32 %v581, %v722
        %v759 = vadd.f32 %v582, %v727
        %v760 = vadd.f32 %v583, %v730
        %v761 = vadd.f32 %v584, %v735
        %v762 = vadd.f32 %v585, %v738
        %v763 = vadd.f32 %v586, %v743
        %v764 = vadd.f32 %v587, %v746
        %765 = vst [vmem:[#allocation2] sm:$0xff] %v749
        %766 = vst [vmem:[#allocation2 + $0x8] sm:$0xff] %v750
        %767 = vst [vmem:[#allocation2 + $0x10] sm:$0xff] %v751
        %768 = vst [vmem:[#allocation2 + $0x18] sm:$0xff] %v752
        %769 = vst [vmem:[#allocation2 + $0x20] sm:$0xff] %v753
        %770 = vst [vmem:[#allocation2 + $0x28] sm:$0xff] %v754
        %771 = vst [vmem:[#allocation2 + $0x30] sm:$0xff] %v755
        %772 = vst [vmem:[#allocation2 + $0x38] sm:$0xff] %v756
        %773 = vst [vmem:[#allocation2 + $0x40] sm:$0xff] %v757
        %774 = vst [vmem:[#allocation2 + $0x48] sm:$0xff] %v758
        %775 = vst [vmem:[#allocation2 + $0x50] sm:$0xff] %v759
        %776 = vst [vmem:[#allocation2 + $0x58] sm:$0xff] %v760
        %777 = vst [vmem:[#allocation2 + $0x60] sm:$0xff] %v761
        %778 = vst [vmem:[#allocation2 + $0x68] sm:$0xff] %v762
        %779 = vst [vmem:[#allocation2 + $0x70] sm:$0xff] %v763
        %780 = vst [vmem:[#allocation2 + $0x78] sm:$0xff] %v764
        %p781 = scmp.eq.s32.totalorder %s32, 2
        %p782 = pnand %p781, %p344
        %p783 = pneg %p782
        // Predicated region
        $region49: #{tpu_custom_call.1} parent=35 // pred_check
          _
        $region50: #{tpu_custom_call.1} parent=35 // pred_check_branch
          %785 = sbr.rel (%p782) target = $region52
        $region51: #{tpu_custom_call.1} parent=35 // pred_region
          %v786 = vld [vmem:[#allocation2] sm:$0xff]
          %v787 = vld [vmem:[#allocation2 + $0x8] sm:$0xff]
          %v788 = vld [vmem:[#allocation2 + $0x10] sm:$0xff]
          %v789 = vld [vmem:[#allocation2 + $0x18] sm:$0xff]
          %v790 = vld [vmem:[#allocation2 + $0x20] sm:$0xff]
          %v791 = vld [vmem:[#allocation2 + $0x28] sm:$0xff]
          %v792 = vld [vmem:[#allocation2 + $0x30] sm:$0xff]
          %v793 = vld [vmem:[#allocation2 + $0x38] sm:$0xff]
          %v794 = vld [vmem:[#allocation2 + $0x40] sm:$0xff]
          %v795 = vld [vmem:[#allocation2 + $0x48] sm:$0xff]
          %v796 = vld [vmem:[#allocation2 + $0x50] sm:$0xff]
          %v797 = vld [vmem:[#allocation2 + $0x58] sm:$0xff]
          %v798 = vld [vmem:[#allocation2 + $0x60] sm:$0xff]
          %v799 = vld [vmem:[#allocation2 + $0x68] sm:$0xff]
          %v800 = vld [vmem:[#allocation2 + $0x70] sm:$0xff]
          %v801 = vld [vmem:[#allocation2 + $0x78] sm:$0xff]
          %v802 = vmax.f32 %v786, 0.0
          %v803 = vmax.f32 %v787, 0.0
          %v804 = vmax.f32 %v788, 0.0
          %v805 = vmax.f32 %v789, 0.0
          %v806 = vmax.f32 %v790, 0.0
          %v807 = vmax.f32 %v791, 0.0
          %v808 = vmax.f32 %v792, 0.0
          %v809 = vmax.f32 %v793, 0.0
          %v810 = vmax.f32 %v794, 0.0
          %v811 = vmax.f32 %v795, 0.0
          %v812 = vmax.f32 %v796, 0.0
          %v813 = vmax.f32 %v797, 0.0
          %v814 = vmax.f32 %v798, 0.0
          %v815 = vmax.f32 %v799, 0.0
          %v816 = vmax.f32 %v800, 0.0
          %v817 = vmax.f32 %v801, 0.0
          %818 = vst [vmem:[%s328] sm:$0xff] %v802
          %819 = vst [vmem:[%s328 + $0x8] sm:$0xff] %v803
          %820 = vst [vmem:[%s328 + $0x10] sm:$0xff] %v804
          %821 = vst [vmem:[%s328 + $0x18] sm:$0xff] %v805
          %822 = vst [vmem:[%s328 + $0x20] sm:$0xff] %v806
          %823 = vst [vmem:[%s328 + $0x28] sm:$0xff] %v807
          %824 = vst [vmem:[%s328 + $0x30] sm:$0xff] %v808
          %825 = vst [vmem:[%s328 + $0x38] sm:$0xff] %v809
          %826 = vst [vmem:[%s328 + $0x40] sm:$0xff] %v810
          %827 = vst [vmem:[%s328 + $0x48] sm:$0xff] %v811
          %828 = vst [vmem:[%s328 + $0x50] sm:$0xff] %v812
          %829 = vst [vmem:[%s328 + $0x58] sm:$0xff] %v813
          %830 = vst [vmem:[%s328 + $0x60] sm:$0xff] %v814
          %831 = vst [vmem:[%s328 + $0x68] sm:$0xff] %v815
          %832 = vst [vmem:[%s328 + $0x70] sm:$0xff] %v816
          %833 = vst [vmem:[%s328 + $0x78] sm:$0xff] %v817
        $region52: #{tpu_custom_call.1} parent=35 // pred_fallthru
          _
        %s834 = sand.u32 %s171, 1
        %s835 = scalar_lea.sflag [#allocation5], %s834
        %s836 = sand.u32 %s171, 1
        %s837 = smul.addr %s836, 128
        %s838 = scalar_lea.vmem [#allocation8], %s837
        // Predicated region
        $region53: #{tpu_custom_call.1} parent=35 // pred_check
          %p839 = pneg %p181
        $region54: #{tpu_custom_call.1} parent=35 // pred_check_branch
          %841 = sbr.rel (%p839) target = $region56
        $region55: #{tpu_custom_call.1} parent=35 // pred_region
          %s842 = smul.u32 16, %s31
          %s844 = ssub.s32 2048, 2048
          %845 = vsyncadd %s835, %s844
          %s846 = smul.addr %s30, 16
          %s847 = sadd.s32 %s842, %s846
          %s848 = smul.addr %s847, 128
          %s849 = scalar_lea.hbm %s4, %s848
          %s850 = sshll.u32 %s838, 4
          %s851 = int_to_ptr.vmem [resolvable:$true] %s850
          %856 = dma.vmem_to_hbm [thread:$0]  %s851, 2048, %s849, %s835, 128, 128, 8
        $region56: #{tpu_custom_call.1} parent=35 // pred_fallthru
          _
      $region36: #{tpu_custom_call.1} parent=5 // pred_fallthru
        _
      %p857 = scmp.le.s32.totalorder 2, %s19
      // Predicated region
      $region57: #{tpu_custom_call.1} parent=5 // pred_check
        %p858 = pneg %p857
      $region58: #{tpu_custom_call.1} parent=5 // pred_check_branch
        %860 = sbr.rel (%p858) target = $region60
      $region59: #{tpu_custom_call.1} parent=5 // pred_region
        %s861 = ssub.s32 %s19, 2
        // Predicated region
        $region61: #{tpu_custom_call.1} parent=59 // pred_check
          %p862 = pneg %p187
        $region62: #{tpu_custom_call.1} parent=59 // pred_check_branch
          %864 = sbr.rel (%p862) target = $region64
        $region63: #{tpu_custom_call.1} parent=59 // pred_region
          %s865 = sand.u32 %s172, 1
          %s866 = scalar_lea.sflag [#allocation5], %s865
          %s867 = sand.u32 %s172, 1
          %s868 = smul.addr %s867, 128
          %s869 = scalar_lea.vmem [#allocation8], %s868
          %870 = dma.done %s866, 2048
        $region64: #{tpu_custom_call.1} parent=59 // pred_fallthru
          _
      $region60: #{tpu_custom_call.1} parent=5 // pred_fallthru
        _
    $region6: #{tpu_custom_call.1} parent=1 // loop_footer
      %s23 = sadd.s32 1, %s19
    $region7: #{tpu_custom_call.1} parent=1 // loop_footer_branch
      %18 = sbr.rel target = $region3
    $region8: #{tpu_custom_call.1} parent=1 // loop_exit
      _
    %871 = vsyncpa [#allocation4], 1
    %s872 = scalar_lea.sflag [#allocation4], 1
    %873 = vsyncpa %s872, 1
    %874 = vsyncpa [#allocation7], 1
    %s875 = scalar_lea.sflag [#allocation7], 1
    %876 = vsyncpa %s875, 1
    %877 = vsyncpa [#allocation5], 1
    %s878 = scalar_lea.sflag [#allocation5], 1
    %879 = vsyncpa %s878, 1

// kernel: tpu_custom_call.1
$region0: #{tpu_custom_call.1}
  #allocation0 [shape = 'u32[]', space=smem, size = 0x4, offset = 0x4, fixed_abs, tag = 'smem constant byte address 0x4 - core index']
  #allocation1 [shape = 'u32[144,128]{1,0:T(1,128)}', space=vmem, size = 0x12000, scoped, tag = 'internal scratch']
  #allocation2 [shape = 'f32[128,128]{1,0:T(8,128)}', space=vmem, size = 0x10000, scoped, tag = 'scratch operand']
  %s0 = inlined_call_operand.hbm [shape: f32[2,3,128,128], index: 0, kind: input, shape index: {}]
  %s1 = inlined_call_operand.hbm [shape: bf16[2,3,128,128], index: 1, kind: input, shape index: {}]
  %s2 = inlined_call_operand.vmem [shape: bf16[2,128,8], index: 2, kind: input, shape index: {}]
  %s3 = inlined_call_operand.vmem [shape: bf16[8,128], index: 3, kind: input, shape index: {}]
  %s4 = inlined_call_operand.hbm [shape: f32[2,128,128], index: 4, kind: output, shape index: {}]
  %s5 = sld [smem:[#allocation0]]
  $region65: #{tpu_custom_call.1} parent=0
    _
  %s7 = ssub.s32 1, %s5
  %s8 = scalar_select 0, %s7, %s5
  $region1: #{tpu_custom_call.1} parent=0
    #allocation3 [shape = 'u8[131072]{0}', space=vmem, size = 0x20000, scoped, tag = 'input window, operand 0']
    #allocation4 [shape = 's32[2]{0}', space=sflag, size = 0x8, scoped, tag = 'scoped memory for tpu_custom_call.1']
    #allocation5 [shape = 's32[2]{0}', space=sflag, size = 0x8, scoped, tag = 'scoped memory for tpu_custom_call.1']
    #allocation6 [shape = 'u8[65536]{0}', space=vmem, size = 0x10000, scoped, tag = 'input window, operand 1']
    #allocation7 [shape = 's32[2]{0}', space=sflag, size = 0x8, scoped, tag = 'scoped memory for tpu_custom_call.1']
    #allocation8 [shape = 'u8[131072]{0}', space=vmem, size = 0x20000, scoped, tag = 'output window, operand 0']
    %9 = vsyncpa [#allocation4], 0
    %s10 = scalar_lea.sflag [#allocation4], 1
    %11 = vsyncpa %s10, 0
    %12 = vsyncpa [#allocation7], 0
    %s13 = scalar_lea.sflag [#allocation7], 1
    %14 = vsyncpa %s13, 0
    %15 = vsyncpa [#allocation5], 0
    %s16 = scalar_lea.sflag [#allocation5], 1
    %17 = vsyncpa %s16, 0
    loop: start=0, step=1, limit=8
    $region2: #{tpu_custom_call.1} parent=1 // loop_pre_header
      _
    $region3: #{tpu_custom_call.1} parent=1 // loop_header
      %s19 = sphi 0, %s23
      %p20 = scmp.ge.s32.totalorder %s19, 8
      %s26 = sphi 0, %s52
      %s27 = sphi 0, %s48
      %s28 = sphi 0, %s44
      %s29 = sphi 0, %s40
      %s30 = sphi 0, %s26
      %s31 = sphi 0, %s27
      %s32 = sphi 0, %s28
      %s33 = sphi 0, %s29
      %s34 = sphi 0, %s30
      %s35 = sphi 0, %s31
      %s36 = sphi 0, %s32
      %s37 = sphi 0, %s33
      %s61 = sphi 0, %s63
      %s64 = sphi 0, %s61
      %s65 = sphi 0, %s64
      %s81 = sphi 0, %s65
      %s91 = sphi 0, %s93
      %s94 = sphi 0, %s91
      %s95 = sphi 0, %s94
      %s111 = sphi 0, %s95
      %s119 = sphi 0, %s121
      %s122 = sphi 0, %s119
      %s123 = sphi 0, %s122
      %s139 = sphi 0, %s123
      %s143 = sphi 0, %s143
      %s145 = sphi 0, %s143
      %s146 = sphi 0, %s145
      %s160 = sphi 0, %s146
      %s168 = sphi 0, %s170
      %s171 = sphi 0, %s168
      %s172 = sphi 0, %s171
      %s188 = sphi 0, %s172
    $region4: #{tpu_custom_call.1} parent=1 // loop_header_branch
      %22 = sbr.rel (%p20) target = $region8
    $region5: #{tpu_custom_call.1} parent=1 // loop_body
      %s24 = ssub.s32 %s19, 1
      %s25 = ssub.s32 %s19, 2
      %s38 = sadd.s32 1, %s29
      %p39 = scmp.ge.s32.totalorder %s38, 1
      %s40 = scalar_select %p39, 0, %s38
      %s41 = sadd.s32 1, %s28
      %s42 = scalar_select %p39, %s41, %s28
      %p43 = scmp.ge.s32.totalorder %s42, 3
      %s44 = scalar_select %p43, 0, %s42
      %s45 = sadd.s32 1, %s27
      %s46 = scalar_select %p43, %s45, %s27
      %p47 = scmp.ge.s32.totalorder %s46, 1
      %s48 = scalar_select %p47, 0, %s46
      %s49 = sadd.s32 1, %s26
      %s50 = scalar_select %p47, %s49, %s26
      %p51 = scmp.ge.s32.totalorder %s50, 2
      %s52 = scalar_select %p51, 0, %s50
      %s53 = ssub.s32 %s26, %s52
      %s54 = ssub.s32 %s28, %s44
      %s55 = sor.u32 %s53, %s54
      %s56 = ssub.s32 %s27, %s48
      %s57 = sor.u32 %s55, %s56
      %s58 = ssub.s32 %s29, %s40
      %s59 = sor.u32 %s57, %s58
      %p60 = scmp.eq.s32.totalorder %s59, 0
      %s62 = sadd.s32 %s61, 1
      %s63 = scalar_select %p60, %s61, %s62
      %p66 = pneg %p60
      %p67 = scmp.eq.s32.totalorder %s19, 5
      %p68 = por %p66, %p67
      %p69 = scmp.ne.s32.totalorder %s61, %s64
      %p70 = scmp.eq.s32.totalorder %s19, 0
      %p71 = por %p69, %p70
      %p72 = scmp.ne.s32.totalorder %s61, %s64
      %p73 = scmp.eq.s32.totalorder %s24, 5
      %p74 = por %p72, %p73
      %p75 = scmp.ne.s32.totalorder %s64, %s65
      %p76 = scmp.eq.s32.totalorder %s24, 0
      %p77 = por %p75, %p76
      %p78 = scmp.ne.s32.totalorder %s64, %s65
      %p79 = scmp.eq.s32.totalorder %s25, 5
      %p80 = por %p78, %p79
      %p82 = scmp.ne.s32.totalorder %s65, %s81
      %p83 = scmp.eq.s32.totalorder %s25, 0
      %p84 = por %p82, %p83
      %s85 = ssub.s32 %s26, %s52
      %s86 = ssub.s32 %s28, %s44
      %s87 = sor.u32 %s85, %s86
      %s88 = ssub.s32 %s29, %s40
      %s89 = sor.u32 %s87, %s88
      %p90 = scmp.eq.s32.totalorder %s89, 0
      %s92 = sadd.s32 %s91, 1
      %s93 = scalar_select %p90, %s91, %s92
      %p96 = pneg %p90
      %p97 = scmp.eq.s32.totalorder %s19, 5
      %p98 = por %p96, %p97
      %p99 = scmp.ne.s32.totalorder %s91, %s94
      %p100 = scmp.eq.s32.totalorder %s19, 0
      %p101 = por %p99, %p100
      %p102 = scmp.ne.s32.totalorder %s91, %s94
      %p103 = scmp.eq.s32.totalorder %s24, 5
      %p104 = por %p102, %p103
      %p105 = scmp.ne.s32.totalorder %s94, %s95
      %p106 = scmp.eq.s32.totalorder %s24, 0
      %p107 = por %p105, %p106
      %p108 = scmp.ne.s32.totalorder %s94, %s95
      %p109 = scmp.eq.s32.totalorder %s25, 5
      %p110 = por %p108, %p109
      %p112 = scmp.ne.s32.totalorder %s95, %s111
      %p113 = scmp.eq.s32.totalorder %s25, 0
      %p114 = por %p112, %p113
      %s115 = ssub.s32 %s26, %s52
      %s116 = ssub.s32 %s27, %s48
      %s117 = sor.u32 %s115, %s116
      %p118 = scmp.eq.s32.totalorder %s117, 0
      %s120 = sadd.s32 %s119, 1
      %s121 = scalar_select %p118, %s119, %s120
      %p124 = pneg %p118
      %p125 = scmp.eq.s32.totalorder %s19, 5
      %p126 = por %p124, %p125
      %p127 = scmp.ne.s32.totalorder %s119, %s122
      %p128 = scmp.eq.s32.totalorder %s19, 0
      %p129 = por %p127, %p128
      %p130 = scmp.ne.s32.totalorder %s119, %s122
      %p131 = scmp.eq.s32.totalorder %s24, 5
      %p132 = por %p130, %p131
      %p133 = scmp.ne.s32.totalorder %s122, %s123
      %p134 = scmp.eq.s32.totalorder %s24, 0
      %p135 = por %p133, %p134
      %p136 = scmp.ne.s32.totalorder %s122, %s123
      %p137 = scmp.eq.s32.totalorder %s25, 5
      %p138 = por %p136, %p137
      %p140 = scmp.ne.s32.totalorder %s123, %s139
      %p141 = scmp.eq.s32.totalorder %s25, 0
      %p142 = por %p140, %p141
      %s144 = sadd.s32 %s143, 1
      %p147 = scmp.eq.s32.totalorder %s19, 5
      %p148 = scmp.ne.s32.totalorder %s143, %s145
      %p149 = scmp.eq.s32.totalorder %s19, 0
      %p150 = por %p148, %p149
      %p151 = scmp.ne.s32.totalorder %s143, %s145
      %p152 = scmp.eq.s32.totalorder %s24, 5
      %p153 = por %p151, %p152
      %p154 = scmp.ne.s32.totalorder %s145, %s146
      %p155 = scmp.eq.s32.totalorder %s24, 0
      %p156 = por %p154, %p155
      %p157 = scmp.ne.s32.totalorder %s145, %s146
      %p158 = scmp.eq.s32.totalorder %s25, 5
      %p159 = por %p157, %p158
      %p161 = scmp.ne.s32.totalorder %s146, %s160
      %p162 = scmp.eq.s32.totalorder %s25, 0
      %p163 = por %p161, %p162
      %s164 = ssub.s32 %s26, %s52
      %s165 = ssub.s32 %s27, %s48
      %s166 = sor.u32 %s164, %s165
      %p167 = scmp.eq.s32.totalorder %s166, 0
      %s169 = sadd.s32 %s168, 1
      %s170 = scalar_select %p167, %s168, %s169
      %p173 = pneg %p167
      %p174 = scmp.eq.s32.totalorder %s19, 5
      %p175 = por %p173, %p174
      %p176 = scmp.ne.s32.totalorder %s168, %s171
      %p177 = scmp.eq.s32.totalorder %s19, 0
      %p178 = por %p176, %p177
      %p179 = scmp.ne.s32.totalorder %s168, %s171
      %p180 = scmp.eq.s32.totalorder %s24, 5
      %p181 = por %p179, %p180
      %p182 = scmp.ne.s32.totalorder %s171, %s172
      %p183 = scmp.eq.s32.totalorder %s24, 0
      %p184 = por %p182, %p183
      %p185 = scmp.ne.s32.totalorder %s171, %s172
      %p186 = scmp.eq.s32.totalorder %s25, 5
      %p187 = por %p185, %p186
      %p189 = scmp.ne.s32.totalorder %s172, %s188
      %p190 = scmp.eq.s32.totalorder %s25, 0
      %p191 = por %p189, %p190
      %p192 = scmp.le.s32.totalorder 1, %s19
      %p193 = scmp.lt.s32.totalorder %s19, 7
      %p194 = pnand %p192, %p193
      %p195 = pneg %p194
      // Predicated region
      $region9: #{tpu_custom_call.1} parent=5 // pred_check
        _
      $region10: #{tpu_custom_call.1} parent=5 // pred_check_branch
        %197 = sbr.rel (%p194) target = $region12
      $region11: #{tpu_custom_call.1} parent=5 // pred_region
        %s198 = ssub.s32 %s19, 1
        // Predicated region
        $region13: #{tpu_custom_call.1} parent=11 // pred_check
          %p199 = pneg %p156
        $region14: #{tpu_custom_call.1} parent=11 // pred_check_branch
          %201 = sbr.rel (%p199) target = $region16
        $region15: #{tpu_custom_call.1} parent=11 // pred_region
          _
        $region16: #{tpu_custom_call.1} parent=11 // pred_fallthru
          _
      $region12: #{tpu_custom_call.1} parent=5 // pred_fallthru
        _
      %p202 = scmp.lt.s32.totalorder %s19, 6
      // Predicated region
      $region17: #{tpu_custom_call.1} parent=5 // pred_check
        %p203 = pneg %p202
      $region18: #{tpu_custom_call.1} parent=5 // pred_check_branch
        %205 = sbr.rel (%p203) target = $region20
      $region19: #{tpu_custom_call.1} parent=5 // pred_region
        // Predicated region
        $region21: #{tpu_custom_call.1} parent=19 // pred_check
          %p206 = pneg %p71
        $region22: #{tpu_custom_call.1} parent=19 // pred_check_branch
          %208 = sbr.rel (%p206) target = $region24
        $region23: #{tpu_custom_call.1} parent=19 // pred_region
          %s209 = sand.u32 %s61, 1
          %s210 = scalar_lea.sflag [#allocation4], %s209
          %s211 = sand.u32 %s61, 1
          %s212 = smul.addr %s211, 128
          %s213 = scalar_lea.vmem [#allocation3], %s212
          %s214 = smul.u32 16, %s27
          %s216 = ssub.s32 2048, 2048
          %217 = vsyncadd %s210, %s216
          %s218 = sadd.s32 %s29, %s214
          %s219 = smul.addr %s28, 16
          %s220 = sadd.s32 %s218, %s219
          %s221 = smul.addr %s26, 48
          %s222 = sadd.s32 %s220, %s221
          %s223 = smul.addr %s222, 128
          %s224 = scalar_lea.hbm %s0, %s223
          %s225 = sshll.u32 %s213, 4
          %s226 = int_to_ptr.vmem [resolvable:$true] %s225
          %231 = dma.hbm_to_vmem [thread:$0]  %s224, 2048, %s226, %s210, 128, 128, 8
        $region24: #{tpu_custom_call.1} parent=19 // pred_fallthru
          _
        // Predicated region
        $region25: #{tpu_custom_call.1} parent=19 // pred_check
          %p232 = pneg %p101
        $region26: #{tpu_custom_call.1} parent=19 // pred_check_branch
          %234 = sbr.rel (%p232) target = $region28
        $region27: #{tpu_custom_call.1} parent=19 // pred_region
          %s235 = sand.u32 %s91, 1
          %s236 = scalar_lea.sflag [#allocation7], %s235
          %s237 = sand.u32 %s91, 1
          %s238 = smul.addr %s237, 64
          %s239 = scalar_lea.vmem [#allocation6], %s238
          %s240 = smul.u32 16, %s29
          %s242 = ssub.s32 1024, 1024
          %243 = vsyncadd %s236, %s242
          %s244 = smul.addr %s28, 16
          %s245 = sadd.s32 %s240, %s244
          %s246 = smul.addr %s26, 48
          %s247 = sadd.s32 %s245, %s246
          %s248 = smul.addr %s247, 64
          %s249 = scalar_lea.hbm %s1, %s248
          %s250 = sshll.u32 %s239, 4
          %s251 = int_to_ptr.vmem [resolvable:$true] %s250
          %256 = dma.hbm_to_vmem [thread:$0]  %s249, 1024, %s251, %s236, 64, 64, 4
        $region28: #{tpu_custom_call.1} parent=19 // pred_fallthru
          _
        // Predicated region
        $region29: #{tpu_custom_call.1} parent=19 // pred_check
          %p257 = pneg %p129
        $region30: #{tpu_custom_call.1} parent=19 // pred_check_branch
          %259 = sbr.rel (%p257) target = $region32
        $region31: #{tpu_custom_call.1} parent=19 // pred_region
          %s260 = smul.u32 16, %s27
          %p261 = scmp.lt.s32.totalorder %s26, 1
          %s262 = scalar_select %p261, %s26, 1
          %p263 = scmp.lt.s32.totalorder %s260, 15
          %s264 = scalar_select %p263, %s260, 15
          %s265 = smul.addr %s262, 16
          %s266 = sadd.s32 %s264, %s265
          %s267 = smul.addr %s266, 4
          %s268 = scalar_lea.vmem %s2, %s267
          %s269 = smul.u32 16, %s27
        $region32: #{tpu_custom_call.1} parent=19 // pred_fallthru
          _
      $region20: #{tpu_custom_call.1} parent=5 // pred_fallthru
        _
      %p270 = scmp.le.s32.totalorder 1, %s19
      %p271 = scmp.lt.s32.totalorder %s19, 7
      %p272 = pnand %p270, %p271
      %p273 = pneg %p272
      // Predicated region
      $region33: #{tpu_custom_call.1} parent=5 // pred_check
        _
      $region34: #{tpu_custom_call.1} parent=5 // pred_check_branch
        %275 = sbr.rel (%p272) target = $region36
      $region35: #{tpu_custom_call.1} parent=5 // pred_region
        %s276 = ssub.s32 %s19, 1
        %s277 = sand.u32 %s64, 1
        %s278 = scalar_lea.sflag [#allocation4], %s277
        %s279 = sand.u32 %s64, 1
        %s280 = smul.addr %s279, 128
        %s281 = scalar_lea.vmem [#allocation3], %s280
        // Predicated region
        $region37: #{tpu_custom_call.1} parent=35 // pred_check
          %p282 = pneg %p77
        $region38: #{tpu_custom_call.1} parent=35 // pred_check_branch
          %284 = sbr.rel (%p282) target = $region40
        $region39: #{tpu_custom_call.1} parent=35 // pred_region
          %285 = dma.done %s278, 2048
        $region40: #{tpu_custom_call.1} parent=35 // pred_fallthru
          _
        %s286 = sand.u32 %s94, 1
        %s287 = scalar_lea.sflag [#allocation7], %s286
        %s288 = sand.u32 %s94, 1
        %s289 = smul.addr %s288, 64
        %s290 = scalar_lea.vmem [#allocation6], %s289
        // Predicated region
        $region41: #{tpu_custom_call.1} parent=35 // pred_check
          %p291 = pneg %p107
        $region42: #{tpu_custom_call.1} parent=35 // pred_check_branch
          %293 = sbr.rel (%p291) target = $region44
        $region43: #{tpu_custom_call.1} parent=35 // pred_region
          %294 = dma.done %s287, 1024
        $region44: #{tpu_custom_call.1} parent=35 // pred_fallthru
          _
        %s295 = sand.u32 %s64, 1
        %s296 = scalar_lea.sflag [#allocation4], %s295
        %s297 = sand.u32 %s64, 1
        %s298 = smul.addr %s297, 128
        %s299 = scalar_lea.vmem [#allocation3], %s298
        %p300 = pneg %p77
        %p301 = pneg %p74
        %s302 = sand.u32 %s94, 1
        %s303 = scalar_lea.sflag [#allocation7], %s302
        %s304 = sand.u32 %s94, 1
        %s305 = smul.addr %s304, 64
        %s306 = scalar_lea.vmem [#allocation6], %s305
        %p307 = pneg %p107
        %p308 = pneg %p104
        %s309 = smul.u32 16, %s31
        %p310 = scmp.lt.s32.totalorder %s30, 1
        %s311 = scalar_select %p310, %s30, 1
        %p312 = scmp.lt.s32.totalorder %s309, 15
        %s313 = scalar_select %p312, %s309, 15
        %s314 = smul.addr %s311, 16
        %s315 = sadd.s32 %s313, %s314
        %s316 = smul.addr %s315, 4
        %s317 = scalar_lea.vmem %s2, %s316
        %p318 = pneg %p135
        %p319 = pneg %p132
        %p320 = pneg %p156
        %p321 = pneg %p153
        %p322 = pneg %p184
        %p323 = pneg %p181
        %s324 = sand.u32 %s171, 1
        %s325 = scalar_lea.sflag [#allocation5], %s324
        %s326 = sand.u32 %s171, 1
        %s327 = smul.addr %s326, 128
        %s328 = scalar_lea.vmem [#allocation8], %s327
        %s329 = smul.u32 16, %s31
        %s330 = smul.u32 16, %s33
        %s331 = smul.u32 16, %s31
        %p332 = scmp.lt.s32.totalorder %s30, 1
        %s333 = scalar_select %p332, %s30, 1
        %p334 = scmp.lt.s32.totalorder %s331, 15
        %s335 = scalar_select %p334, %s331, 15
        %s336 = smul.addr %s333, 16
        %s337 = sadd.s32 %s335, %s336
        %s338 = smul.addr %s337, 4
        %s339 = scalar_lea.vmem %s2, %s338
        %s340 = smul.u32 16, %s31
        %s341 = smul.u32 16, %s31
        %p343 = scmp.eq.s32.totalorder %s32, 0
        %p344 = scmp.eq.s32.totalorder %s33, 0
        %p345 = pnand %p343, %p344
        %p346 = pneg %p345
        // Predicated region
        $region45: #{tpu_custom_call.1} parent=35 // pred_check
          _
        $region46: #{tpu_custom_call.1} parent=35 // pred_check_branch
          %348 = sbr.rel (%p345) target = $region48
        $region47: #{tpu_custom_call.1} parent=35 // pred_region
          %v349 = vld [vmem:[%s339] sm:$0xf]
          %v350 = vld [vmem:[%s339 + $0x4] sm:$0xf]
          %v351 = vld [vmem:[%s339 + $0x8] sm:$0xf]
          %v352 = vld [vmem:[%s339 + $0xc] sm:$0xf]
          %v353 = vld [vmem:[%s339 + $0x10] sm:$0xf]
          %v354 = vld [vmem:[%s339 + $0x14] sm:$0xf]
          %v355 = vld [vmem:[%s339 + $0x18] sm:$0xf]
          %v356 = vld [vmem:[%s339 + $0x1c] sm:$0xf]
          %v357 = vld [vmem:[%s339 + $0x20] sm:$0xf]
          %v358 = vld [vmem:[%s339 + $0x24] sm:$0xf]
          %v359 = vld [vmem:[%s339 + $0x28] sm:$0xf]
          %v360 = vld [vmem:[%s339 + $0x2c] sm:$0xf]
          %v361 = vld [vmem:[%s339 + $0x30] sm:$0xf]
          %v362 = vld [vmem:[%s339 + $0x34] sm:$0xf]
          %v363 = vld [vmem:[%s339 + $0x38] sm:$0xf]
          %v364 = vld [vmem:[%s339 + $0x3c] sm:$0xf]
          %v365 = vld [vmem:[%s3] sm:$0xf]
          %v382 = vunpack.c.l.b16 %v349
          %v383 = vunpack.c.l.b16 %v350
          %v384 = vunpack.c.l.b16 %v351
          %v385 = vunpack.c.l.b16 %v352
          %v386 = vunpack.c.l.b16 %v353
          %v387 = vunpack.c.l.b16 %v354
          %v388 = vunpack.c.l.b16 %v355
          %v389 = vunpack.c.l.b16 %v356
          %v390 = vunpack.c.l.b16 %v357
          %v391 = vunpack.c.l.b16 %v358
          %v392 = vunpack.c.l.b16 %v359
          %v393 = vunpack.c.l.b16 %v360
          %v394 = vunpack.c.l.b16 %v361
          %v395 = vunpack.c.l.b16 %v362
          %v396 = vunpack.c.l.b16 %v363
          %v397 = vunpack.c.l.b16 %v364
          %v398 = vpack.c.b16 %v383, %v382
          %v399 = vpack.c.b16 %v385, %v384
          %v400 = vpack.c.b16 %v387, %v386
          %v401 = vpack.c.b16 %v389, %v388
          %v402 = vpack.c.b16 %v391, %v390
          %v403 = vpack.c.b16 %v393, %v392
          %v404 = vpack.c.b16 %v395, %v394
          %v405 = vpack.c.b16 %v397, %v396
          %vm406 = vcmask 64512
          %v408 = vsel %vm406, %v398, 0
          %v411 = vsel %vm406, %v399, 0
          %v414 = vsel %vm406, %v400, 0
          %v417 = vsel %vm406, %v401, 0
          %v420 = vsel %vm406, %v402, 0
          %v423 = vsel %vm406, %v403, 0
          %v426 = vsel %vm406, %v404, 0
          %v429 = vsel %vm406, %v405, 0
          %vm431 = vcmask 1043456
          %v433 = vsel %vm431, %v365, 0
          %435 = vmatprep.subr.bf16.mxu0 0
          %436 = vmatpush1.bf16.msra.mxu0 %v433
          %437 = vmatprep.subr.bf16.mxu0 0
          %438 = vmatpush1.bf16.msra.mxu0 0
          %439 = vmatprep.subr.bf16.mxu0 0
          %440 = vmatpush1.bf16.msra.mxu0 0
          %441 = vmatprep.subr.bf16.mxu0 0
          %442 = vmatpush1.bf16.msra.mxu0 0
          %443 = vmatprep.subr.bf16.mxu0 0
          %444 = vmatpush1.bf16.msra.mxu0 0
          %445 = vmatprep.subr.bf16.mxu0 0
          %446 = vmatpush1.bf16.msra.mxu0 0
          %447 = vmatprep.subr.bf16.mxu0 0
          %448 = vmatpush1.bf16.msra.mxu0 0
          %449 = vmatprep.subr.bf16.mxu0 0
          %450 = vmatpush1.bf16.msra.mxu0 0
          %451 = vmatprep.subr.bf16.mxu0 0
          %452 = vmatpush1.bf16.msra.mxu0 0
          %453 = vmatprep.subr.bf16.mxu0 0
          %454 = vmatpush1.bf16.msra.mxu0 0
          %455 = vmatprep.subr.bf16.mxu0 0
          %456 = vmatpush1.bf16.msra.mxu0 0
          %457 = vmatprep.subr.bf16.mxu0 0
          %458 = vmatpush1.bf16.msra.mxu0 0
          %459 = vmatprep.subr.bf16.mxu0 0
          %460 = vmatpush1.bf16.msra.mxu0 0
          %461 = vmatprep.subr.bf16.mxu0 0
          %462 = vmatpush1.bf16.msra.mxu0 0
          %463 = vmatprep.subr.bf16.mxu0 0
          %464 = vmatpush1.bf16.msra.mxu0 0
          %465 = vmatprep.subr.bf16.mxu0 0
          %466 = vmatpush1.bf16.msra.mxu0 0
          %467 = vmatprep.mubr.bf16.mxu0 0
          %468 = vmatmul.mubr.bf16.gmra.mrb[0].mxu0 %v408
          %v469 = vpop.f32.mrb[0].mxu0
          %v470 = vadd.f32 0.0, %v469
          %v471 = vpop.f32.mrb[0].mxu0
          %v472 = vpop.f32.mrb[0].mxu0
          %v473 = vadd.f32 0.0, %v472
          %v474 = vpop.f32.mrb[0].mxu0
          %475 = vmatprep.mubr.bf16.mxu0 0
          %476 = vmatmul.mubr.bf16.gmra.mrb[0].mxu0 %v411
          %v477 = vpop.f32.mrb[0].mxu0
          %v478 = vadd.f32 0.0, %v477
          %v479 = vpop.f32.mrb[0].mxu0
          %v480 = vpop.f32.mrb[0].mxu0
          %v481 = vadd.f32 0.0, %v480
          %v482 = vpop.f32.mrb[0].mxu0
          %483 = vmatprep.mubr.bf16.mxu0 0
          %484 = vmatmul.mubr.bf16.gmra.mrb[0].mxu0 %v414
          %v485 = vpop.f32.mrb[0].mxu0
          %v486 = vadd.f32 0.0, %v485
          %v487 = vpop.f32.mrb[0].mxu0
          %v488 = vpop.f32.mrb[0].mxu0
          %v489 = vadd.f32 0.0, %v488
          %v490 = vpop.f32.mrb[0].mxu0
          %491 = vmatprep.mubr.bf16.mxu0 0
          %492 = vmatmul.mubr.bf16.gmra.mrb[0].mxu0 %v417
          %v493 = vpop.f32.mrb[0].mxu0
          %v494 = vadd.f32 0.0, %v493
          %v495 = vpop.f32.mrb[0].mxu0
          %v496 = vpop.f32.mrb[0].mxu0
          %v497 = vadd.f32 0.0, %v496
          %v498 = vpop.f32.mrb[0].mxu0
          %499 = vmatprep.mubr.bf16.mxu0 0
          %500 = vmatmul.mubr.bf16.gmra.mrb[0].mxu0 %v420
          %v501 = vpop.f32.mrb[0].mxu0
          %v502 = vadd.f32 0.0, %v501
          %v503 = vpop.f32.mrb[0].mxu0
          %v504 = vpop.f32.mrb[0].mxu0
          %v505 = vadd.f32 0.0, %v504
          %v506 = vpop.f32.mrb[0].mxu0
          %507 = vmatprep.mubr.bf16.mxu0 0
          %508 = vmatmul.mubr.bf16.gmra.mrb[0].mxu0 %v423
          %v509 = vpop.f32.mrb[0].mxu0
          %v510 = vadd.f32 0.0, %v509
          %v511 = vpop.f32.mrb[0].mxu0
          %v512 = vpop.f32.mrb[0].mxu0
          %v513 = vadd.f32 0.0, %v512
          %v514 = vpop.f32.mrb[0].mxu0
          %515 = vmatprep.mubr.bf16.mxu0 0
          %516 = vmatmul.mubr.bf16.gmra.mrb[0].mxu0 %v426
          %v517 = vpop.f32.mrb[0].mxu0
          %v518 = vadd.f32 0.0, %v517
          %v519 = vpop.f32.mrb[0].mxu0
          %v520 = vpop.f32.mrb[0].mxu0
          %v521 = vadd.f32 0.0, %v520
          %v522 = vpop.f32.mrb[0].mxu0
          %523 = vmatprep.mubr.bf16.mxu0 0
          %524 = vmatmul.mubr.bf16.gmra.mrb[0].mxu0 %v429
          %v525 = vpop.f32.mrb[0].mxu0
          %v526 = vadd.f32 0.0, %v525
          %v527 = vpop.f32.mrb[0].mxu0
          %v528 = vpop.f32.mrb[0].mxu0
          %v529 = vadd.f32 0.0, %v528
          %v530 = vpop.f32.mrb[0].mxu0
          %531 = vdwg.mxu0
          %532 = vst [vmem:[#allocation2] sm:$0xff] %v470
          %533 = vst [vmem:[#allocation2 + $0x8] sm:$0xff] %v473
          %534 = vst [vmem:[#allocation2 + $0x10] sm:$0xff] %v478
          %535 = vst [vmem:[#allocation2 + $0x18] sm:$0xff] %v481
          %536 = vst [vmem:[#allocation2 + $0x20] sm:$0xff] %v486
          %537 = vst [vmem:[#allocation2 + $0x28] sm:$0xff] %v489
          %538 = vst [vmem:[#allocation2 + $0x30] sm:$0xff] %v494
          %539 = vst [vmem:[#allocation2 + $0x38] sm:$0xff] %v497
          %540 = vst [vmem:[#allocation2 + $0x40] sm:$0xff] %v502
          %541 = vst [vmem:[#allocation2 + $0x48] sm:$0xff] %v505
          %542 = vst [vmem:[#allocation2 + $0x50] sm:$0xff] %v510
          %543 = vst [vmem:[#allocation2 + $0x58] sm:$0xff] %v513
          %544 = vst [vmem:[#allocation2 + $0x60] sm:$0xff] %v518
          %545 = vst [vmem:[#allocation2 + $0x68] sm:$0xff] %v521
          %546 = vst [vmem:[#allocation2 + $0x70] sm:$0xff] %v526
          %547 = vst [vmem:[#allocation2 + $0x78] sm:$0xff] %v529
        $region48: #{tpu_custom_call.1} parent=35 // pred_fallthru
          _
        %v548 = vld [vmem:[%s281] sm:$0xff]
        %v549 = vld [vmem:[%s281 + $0x8] sm:$0xff]
        %v550 = vld [vmem:[%s281 + $0x10] sm:$0xff]
        %v551 = vld [vmem:[%s281 + $0x18] sm:$0xff]
        %v552 = vld [vmem:[%s281 + $0x20] sm:$0xff]
        %v553 = vld [vmem:[%s281 + $0x28] sm:$0xff]
        %v554 = vld [vmem:[%s281 + $0x30] sm:$0xff]
        %v555 = vld [vmem:[%s281 + $0x38] sm:$0xff]
        %v556 = vld [vmem:[%s281 + $0x40] sm:$0xff]
        %v557 = vld [vmem:[%s281 + $0x48] sm:$0xff]
        %v558 = vld [vmem:[%s281 + $0x50] sm:$0xff]
        %v559 = vld [vmem:[%s281 + $0x58] sm:$0xff]
        %v560 = vld [vmem:[%s281 + $0x60] sm:$0xff]
        %v561 = vld [vmem:[%s281 + $0x68] sm:$0xff]
        %v562 = vld [vmem:[%s281 + $0x70] sm:$0xff]
        %v563 = vld [vmem:[%s281 + $0x78] sm:$0xff]
        %v564 = vpack.c.bf16 %v549, %v548
        %v565 = vpack.c.bf16 %v551, %v550
        %v566 = vpack.c.bf16 %v553, %v552
        %v567 = vpack.c.bf16 %v555, %v554
        %v568 = vpack.c.bf16 %v557, %v556
        %v569 = vpack.c.bf16 %v559, %v558
        %v570 = vpack.c.bf16 %v561, %v560
        %v571 = vpack.c.bf16 %v563, %v562
        %v572 = vld [vmem:[#allocation2] sm:$0xff]
        %v573 = vld [vmem:[#allocation2 + $0x8] sm:$0xff]
        %v574 = vld [vmem:[#allocation2 + $0x10] sm:$0xff]
        %v575 = vld [vmem:[#allocation2 + $0x18] sm:$0xff]
        %v576 = vld [vmem:[#allocation2 + $0x20] sm:$0xff]
        %v577 = vld [vmem:[#allocation2 + $0x28] sm:$0xff]
        %v578 = vld [vmem:[#allocation2 + $0x30] sm:$0xff]
        %v579 = vld [vmem:[#allocation2 + $0x38] sm:$0xff]
        %v580 = vld [vmem:[#allocation2 + $0x40] sm:$0xff]
        %v581 = vld [vmem:[#allocation2 + $0x48] sm:$0xff]
        %v582 = vld [vmem:[#allocation2 + $0x50] sm:$0xff]
        %v583 = vld [vmem:[#allocation2 + $0x58] sm:$0xff]
        %v584 = vld [vmem:[#allocation2 + $0x60] sm:$0xff]
        %v585 = vld [vmem:[#allocation2 + $0x68] sm:$0xff]
        %v586 = vld [vmem:[#allocation2 + $0x70] sm:$0xff]
        %v587 = vld [vmem:[#allocation2 + $0x78] sm:$0xff]
        %v588 = vld [vmem:[%s290] sm:$0xf]
        %v589 = vld [vmem:[%s290 + $0x4] sm:$0xf]
        %v590 = vld [vmem:[%s290 + $0x8] sm:$0xf]
        %v591 = vld [vmem:[%s290 + $0xc] sm:$0xf]
        %v592 = vld [vmem:[%s290 + $0x10] sm:$0xf]
        %v593 = vld [vmem:[%s290 + $0x14] sm:$0xf]
        %v594 = vld [vmem:[%s290 + $0x18] sm:$0xf]
        %v595 = vld [vmem:[%s290 + $0x1c] sm:$0xf]
        %v596 = vld [vmem:[%s290 + $0x20] sm:$0xf]
        %v597 = vld [vmem:[%s290 + $0x24] sm:$0xf]
        %v598 = vld [vmem:[%s290 + $0x28] sm:$0xf]
        %v599 = vld [vmem:[%s290 + $0x2c] sm:$0xf]
        %v600 = vld [vmem:[%s290 + $0x30] sm:$0xf]
        %v601 = vld [vmem:[%s290 + $0x34] sm:$0xf]
        %v602 = vld [vmem:[%s290 + $0x38] sm:$0xf]
        %v603 = vld [vmem:[%s290 + $0x3c] sm:$0xf]
        %v620 = vunpack.c.l.b16 %v588
        %v621 = vunpack.c.l.b16 %v589
        %v622 = vunpack.c.l.b16 %v590
        %v623 = vunpack.c.l.b16 %v591
        %v624 = vunpack.c.l.b16 %v592
        %v625 = vunpack.c.l.b16 %v593
        %v626 = vunpack.c.l.b16 %v594
        %v627 = vunpack.c.l.b16 %v595
        %v628 = vunpack.c.l.b16 %v596
        %v629 = vunpack.c.l.b16 %v597
        %v630 = vunpack.c.l.b16 %v598
        %v631 = vunpack.c.l.b16 %v599
        %v632 = vunpack.c.l.b16 %v600
        %v633 = vunpack.c.l.b16 %v601
        %v634 = vunpack.c.l.b16 %v602
        %v635 = vunpack.c.l.b16 %v603
        %v636 = vpack.c.b16 %v621, %v620
        %v637 = vpack.c.b16 %v623, %v622
        %v638 = vpack.c.b16 %v625, %v624
        %v639 = vpack.c.b16 %v627, %v626
        %v640 = vpack.c.b16 %v629, %v628
        %v641 = vpack.c.b16 %v631, %v630
        %v642 = vpack.c.b16 %v633, %v632
        %v643 = vpack.c.b16 %v635, %v634
        %652 = vmatprep.subr.bf16.mxu0 0
        %653 = vmatpush1.bf16.msra.mxu0 %v636
        %654 = vmatprep.subr.bf16.mxu0 0
        %655 = vmatpush1.bf16.msra.mxu0 %v637
        %656 = vmatprep.subr.bf16.mxu0 0
        %657 = vmatpush1.bf16.msra.mxu0 %v638
        %658 = vmatprep.subr.bf16.mxu0 0
        %659 = vmatpush1.bf16.msra.mxu0 %v639
        %660 = vmatprep.subr.bf16.mxu0 0
        %661 = vmatpush1.bf16.msra.mxu0 %v640
        %662 = vmatprep.subr.bf16.mxu0 0
        %663 = vmatpush1.bf16.msra.mxu0 %v641
        %664 = vmatprep.subr.bf16.mxu0 0
        %665 = vmatpush1.bf16.msra.mxu0 %v642
        %666 = vmatprep.subr.bf16.mxu0 0
        %667 = vmatpush1.bf16.msra.mxu0 %v643
        %668 = vmatprep.subr.bf16.mxu0 0
        %669 = vmatpush1.bf16.msra.mxu0 0
        %670 = vmatprep.subr.bf16.mxu0 0
        %671 = vmatpush1.bf16.msra.mxu0 0
        %672 = vmatprep.subr.bf16.mxu0 0
        %673 = vmatpush1.bf16.msra.mxu0 0
        %674 = vmatprep.subr.bf16.mxu0 0
        %675 = vmatpush1.bf16.msra.mxu0 0
        %676 = vmatprep.subr.bf16.mxu0 0
        %677 = vmatpush1.bf16.msra.mxu0 0
        %678 = vmatprep.subr.bf16.mxu0 0
        %679 = vmatpush1.bf16.msra.mxu0 0
        %680 = vmatprep.subr.bf16.mxu0 0
        %681 = vmatpush1.bf16.msra.mxu0 0
        %682 = vmatprep.subr.bf16.mxu0 0
        %683 = vmatpush1.bf16.msra.mxu0 0
        %684 = vmatprep.mubr.bf16.mxu0 0
        %685 = vmatmul.mubr.bf16.gmra.mrb[0].mxu0 %v564
        %v686 = vpop.f32.mrb[0].mxu0
        %v687 = vadd.f32 0.0, %v686
        %v688 = vpop.f32.mrb[0].mxu0
        %v689 = vpop.f32.mrb[0].mxu0
        %v690 = vadd.f32 0.0, %v689
        %v691 = vpop.f32.mrb[0].mxu0
        %692 = vmatprep.mubr.bf16.mxu0 0
        %693 = vmatmul.mubr.bf16.gmra.mrb[0].mxu0 %v565
        %v694 = vpop.f32.mrb[0].mxu0
        %v695 = vadd.f32 0.0, %v694
        %v696 = vpop.f32.mrb[0].mxu0
        %v697 = vpop.f32.mrb[0].mxu0
        %v698 = vadd.f32 0.0, %v697
        %v699 = vpop.f32.mrb[0].mxu0
        %700 = vmatprep.mubr.bf16.mxu0 0
        %701 = vmatmul.mubr.bf16.gmra.mrb[0].mxu0 %v566
        %v702 = vpop.f32.mrb[0].mxu0
        %v703 = vadd.f32 0.0, %v702
        %v704 = vpop.f32.mrb[0].mxu0
        %v705 = vpop.f32.mrb[0].mxu0
        %v706 = vadd.f32 0.0, %v705
        %v707 = vpop.f32.mrb[0].mxu0
        %708 = vmatprep.mubr.bf16.mxu0 0
        %709 = vmatmul.mubr.bf16.gmra.mrb[0].mxu0 %v567
        %v710 = vpop.f32.mrb[0].mxu0
        %v711 = vadd.f32 0.0, %v710
        %v712 = vpop.f32.mrb[0].mxu0
        %v713 = vpop.f32.mrb[0].mxu0
        %v714 = vadd.f32 0.0, %v713
        %v715 = vpop.f32.mrb[0].mxu0
        %716 = vmatprep.mubr.bf16.mxu0 0
        %717 = vmatmul.mubr.bf16.gmra.mrb[0].mxu0 %v568
        %v718 = vpop.f32.mrb[0].mxu0
        %v719 = vadd.f32 0.0, %v718
        %v720 = vpop.f32.mrb[0].mxu0
        %v721 = vpop.f32.mrb[0].mxu0
        %v722 = vadd.f32 0.0, %v721
        %v723 = vpop.f32.mrb[0].mxu0
        %724 = vmatprep.mubr.bf16.mxu0 0
        %725 = vmatmul.mubr.bf16.gmra.mrb[0].mxu0 %v569
        %v726 = vpop.f32.mrb[0].mxu0
        %v727 = vadd.f32 0.0, %v726
        %v728 = vpop.f32.mrb[0].mxu0
        %v729 = vpop.f32.mrb[0].mxu0
        %v730 = vadd.f32 0.0, %v729
        %v731 = vpop.f32.mrb[0].mxu0
        %732 = vmatprep.mubr.bf16.mxu0 0
        %733 = vmatmul.mubr.bf16.gmra.mrb[0].mxu0 %v570
        %v734 = vpop.f32.mrb[0].mxu0
        %v735 = vadd.f32 0.0, %v734
        %v736 = vpop.f32.mrb[0].mxu0
        %v737 = vpop.f32.mrb[0].mxu0
        %v738 = vadd.f32 0.0, %v737
        %v739 = vpop.f32.mrb[0].mxu0
        %740 = vmatprep.mubr.bf16.mxu0 0
        %741 = vmatmul.mubr.bf16.gmra.mrb[0].mxu0 %v571
        %v742 = vpop.f32.mrb[0].mxu0
        %v743 = vadd.f32 0.0, %v742
        %v744 = vpop.f32.mrb[0].mxu0
        %v745 = vpop.f32.mrb[0].mxu0
        %v746 = vadd.f32 0.0, %v745
        %v747 = vpop.f32.mrb[0].mxu0
        %748 = vdwg.mxu0
        %v749 = vadd.f32 %v572, %v687
        %v750 = vadd.f32 %v573, %v690
        %v751 = vadd.f32 %v574, %v695
        %v752 = vadd.f32 %v575, %v698
        %v753 = vadd.f32 %v576, %v703
        %v754 = vadd.f32 %v577, %v706
        %v755 = vadd.f32 %v578, %v711
        %v756 = vadd.f32 %v579, %v714
        %v757 = vadd.f32 %v580, %v719
        %v758 = vadd.f32 %v581, %v722
        %v759 = vadd.f32 %v582, %v727
        %v760 = vadd.f32 %v583, %v730
        %v761 = vadd.f32 %v584, %v735
        %v762 = vadd.f32 %v585, %v738
        %v763 = vadd.f32 %v586, %v743
        %v764 = vadd.f32 %v587, %v746
        %765 = vst [vmem:[#allocation2] sm:$0xff] %v749
        %766 = vst [vmem:[#allocation2 + $0x8] sm:$0xff] %v750
        %767 = vst [vmem:[#allocation2 + $0x10] sm:$0xff] %v751
        %768 = vst [vmem:[#allocation2 + $0x18] sm:$0xff] %v752
        %769 = vst [vmem:[#allocation2 + $0x20] sm:$0xff] %v753
        %770 = vst [vmem:[#allocation2 + $0x28] sm:$0xff] %v754
        %771 = vst [vmem:[#allocation2 + $0x30] sm:$0xff] %v755
        %772 = vst [vmem:[#allocation2 + $0x38] sm:$0xff] %v756
        %773 = vst [vmem:[#allocation2 + $0x40] sm:$0xff] %v757
        %774 = vst [vmem:[#allocation2 + $0x48] sm:$0xff] %v758
        %775 = vst [vmem:[#allocation2 + $0x50] sm:$0xff] %v759
        %776 = vst [vmem:[#allocation2 + $0x58] sm:$0xff] %v760
        %777 = vst [vmem:[#allocation2 + $0x60] sm:$0xff] %v761
        %778 = vst [vmem:[#allocation2 + $0x68] sm:$0xff] %v762
        %779 = vst [vmem:[#allocation2 + $0x70] sm:$0xff] %v763
        %780 = vst [vmem:[#allocation2 + $0x78] sm:$0xff] %v764
        %p781 = scmp.eq.s32.totalorder %s32, 2
        %p782 = pnand %p781, %p344
        %p783 = pneg %p782
        // Predicated region
        $region49: #{tpu_custom_call.1} parent=35 // pred_check
          _
        $region50: #{tpu_custom_call.1} parent=35 // pred_check_branch
          %785 = sbr.rel (%p782) target = $region52
        $region51: #{tpu_custom_call.1} parent=35 // pred_region
          %v786 = vld [vmem:[#allocation2] sm:$0xff]
          %v787 = vld [vmem:[#allocation2 + $0x8] sm:$0xff]
          %v788 = vld [vmem:[#allocation2 + $0x10] sm:$0xff]
          %v789 = vld [vmem:[#allocation2 + $0x18] sm:$0xff]
          %v790 = vld [vmem:[#allocation2 + $0x20] sm:$0xff]
          %v791 = vld [vmem:[#allocation2 + $0x28] sm:$0xff]
          %v792 = vld [vmem:[#allocation2 + $0x30] sm:$0xff]
          %v793 = vld [vmem:[#allocation2 + $0x38] sm:$0xff]
          %v794 = vld [vmem:[#allocation2 + $0x40] sm:$0xff]
          %v795 = vld [vmem:[#allocation2 + $0x48] sm:$0xff]
          %v796 = vld [vmem:[#allocation2 + $0x50] sm:$0xff]
          %v797 = vld [vmem:[#allocation2 + $0x58] sm:$0xff]
          %v798 = vld [vmem:[#allocation2 + $0x60] sm:$0xff]
          %v799 = vld [vmem:[#allocation2 + $0x68] sm:$0xff]
          %v800 = vld [vmem:[#allocation2 + $0x70] sm:$0xff]
          %v801 = vld [vmem:[#allocation2 + $0x78] sm:$0xff]
          %v802 = vmax.f32 %v786, 0.0
          %v803 = vmax.f32 %v787, 0.0
          %v804 = vmax.f32 %v788, 0.0
          %v805 = vmax.f32 %v789, 0.0
          %v806 = vmax.f32 %v790, 0.0
          %v807 = vmax.f32 %v791, 0.0
          %v808 = vmax.f32 %v792, 0.0
          %v809 = vmax.f32 %v793, 0.0
          %v810 = vmax.f32 %v794, 0.0
          %v811 = vmax.f32 %v795, 0.0
          %v812 = vmax.f32 %v796, 0.0
          %v813 = vmax.f32 %v797, 0.0
          %v814 = vmax.f32 %v798, 0.0
          %v815 = vmax.f32 %v799, 0.0
          %v816 = vmax.f32 %v800, 0.0
          %v817 = vmax.f32 %v801, 0.0
          %818 = vst [vmem:[%s328] sm:$0xff] %v802
          %819 = vst [vmem:[%s328 + $0x8] sm:$0xff] %v803
          %820 = vst [vmem:[%s328 + $0x10] sm:$0xff] %v804
          %821 = vst [vmem:[%s328 + $0x18] sm:$0xff] %v805
          %822 = vst [vmem:[%s328 + $0x20] sm:$0xff] %v806
          %823 = vst [vmem:[%s328 + $0x28] sm:$0xff] %v807
          %824 = vst [vmem:[%s328 + $0x30] sm:$0xff] %v808
          %825 = vst [vmem:[%s328 + $0x38] sm:$0xff] %v809
          %826 = vst [vmem:[%s328 + $0x40] sm:$0xff] %v810
          %827 = vst [vmem:[%s328 + $0x48] sm:$0xff] %v811
          %828 = vst [vmem:[%s328 + $0x50] sm:$0xff] %v812
          %829 = vst [vmem:[%s328 + $0x58] sm:$0xff] %v813
          %830 = vst [vmem:[%s328 + $0x60] sm:$0xff] %v814
          %831 = vst [vmem:[%s328 + $0x68] sm:$0xff] %v815
          %832 = vst [vmem:[%s328 + $0x70] sm:$0xff] %v816
          %833 = vst [vmem:[%s328 + $0x78] sm:$0xff] %v817
        $region52: #{tpu_custom_call.1} parent=35 // pred_fallthru
          _
        %s834 = sand.u32 %s171, 1
        %s835 = scalar_lea.sflag [#allocation5], %s834
        %s836 = sand.u32 %s171, 1
        %s837 = smul.addr %s836, 128
        %s838 = scalar_lea.vmem [#allocation8], %s837
        // Predicated region
        $region53: #{tpu_custom_call.1} parent=35 // pred_check
          %p839 = pneg %p181
        $region54: #{tpu_custom_call.1} parent=35 // pred_check_branch
          %841 = sbr.rel (%p839) target = $region56
        $region55: #{tpu_custom_call.1} parent=35 // pred_region
          %s842 = smul.u32 16, %s31
          %s844 = ssub.s32 2048, 2048
          %845 = vsyncadd %s835, %s844
          %s846 = smul.addr %s30, 16
          %s847 = sadd.s32 %s842, %s846
          %s848 = smul.addr %s847, 128
          %s849 = scalar_lea.hbm %s4, %s848
          %s850 = sshll.u32 %s838, 4
          %s851 = int_to_ptr.vmem [resolvable:$true] %s850
          %856 = dma.vmem_to_hbm [thread:$0]  %s851, 2048, %s849, %s835, 128, 128, 8
        $region56: #{tpu_custom_call.1} parent=35 // pred_fallthru
          _
      $region36: #{tpu_custom_call.1} parent=5 // pred_fallthru
        _
      %p857 = scmp.le.s32.totalorder 2, %s19
      // Predicated region
      $region57: #{tpu_custom_call.1} parent=5 // pred_check
        %p858 = pneg %p857
      $region58: #{tpu_custom_call.1} parent=5 // pred_check_branch
        %860 = sbr.rel (%p858) target = $region60
      $region59: #{tpu_custom_call.1} parent=5 // pred_region
        %s861 = ssub.s32 %s19, 2
        // Predicated region
        $region61: #{tpu_custom_call.1} parent=59 // pred_check
          %p862 = pneg %p187
        $region62: #{tpu_custom_call.1} parent=59 // pred_check_branch
          %864 = sbr.rel (%p862) target = $region64
        $region63: #{tpu_custom_call.1} parent=59 // pred_region
          %s865 = sand.u32 %s172, 1
          %s866 = scalar_lea.sflag [#allocation5], %s865
          %s867 = sand.u32 %s172, 1
          %s868 = smul.addr %s867, 128
          %s869 = scalar_lea.vmem [#allocation8], %s868
          %870 = dma.done %s866, 2048
        $region64: #{tpu_custom_call.1} parent=59 // pred_fallthru
          _
      $region60: #{tpu_custom_call.1} parent=5 // pred_fallthru
        _
    $region6: #{tpu_custom_call.1} parent=1 // loop_footer
      %s23 = sadd.s32 1, %s19
    $region7: #{tpu_custom_call.1} parent=1 // loop_footer_branch
      %18 = sbr.rel target = $region3
    $region8: #{tpu_custom_call.1} parent=1 // loop_exit
      _
    %871 = vsyncpa [#allocation4], 1
    %s872 = scalar_lea.sflag [#allocation4], 1
    %873 = vsyncpa %s872, 1
    %874 = vsyncpa [#allocation7], 1
    %s875 = scalar_lea.sflag [#allocation7], 1
    %876 = vsyncpa %s875, 1
    %877 = vsyncpa [#allocation5], 1
    %s878 = scalar_lea.sflag [#allocation5], 1
    %879 = vsyncpa %s878, 1

</llo_original>
